<compile_context>
chip_gen: v7x
topology: tpu7x:2x2x1
jax: 0.10.0
libtpu: 0.0.40
codegen_flags: <defaults>
</compile_context>

<pallas_src>
import jax
import jax.numpy as jnp
from jax import lax
from jax.experimental import pallas as pl
from jax.experimental.pallas import tpu as pltpu


BLOCK_CHANNEL = [64, 128, 256, 512]
_COMPUTE_DTYPE = jnp.bfloat16


def _fit(want, full):
    """Largest legal tile extent <= want for an axis of extent `full`:
    either the full axis or a multiple of 8 (second-minor block dim rule)."""
    if want >= full:
        return full
    if full < 8:
        return full
    return max(8, (want // 8) * 8)


def _hw_config():
    """Per-generation tiling config derived from VMEM capacity.
    v7x: 64 MiB/TC, 2 TensorCores -> smaller tiles, conservative vmem limit.
    v5e/v6e: 128 MiB, 1 TensorCore -> bigger rows/step to amortize the
    ~0.35 us per-grid-step overhead.  Falls back to the conservative (v7x)
    settings if the hardware query is unavailable."""
    vmem = 64 * 1024 * 1024
    try:
        info = pltpu.get_tpu_info()
        vmem = int(getattr(info, "vmem_capacity_bytes", vmem))
    except Exception:
        pass
    if vmem > 80 * 1024 * 1024:                    # v5e / v6e (128 MiB VMEM)
        return dict(rows_target=4096, vmem_limit=64 * 1024 * 1024, num_cores=1)
    return dict(rows_target=2048, vmem_limit=48 * 1024 * 1024, num_cores=2)


def _choose_tiles(B, N, rows_target):
    """Pick (TB, TILE_N) giving ~rows_target MLP rows per grid step while
    keeping every block dim either the full extent or a multiple of 8."""
    tb = _fit(max(1, rows_target // max(N, 1)), B)
    tile_n = _fit(max(1, rows_target // max(tb, 1)), N)
    return tb, tile_n


def _make_kernel(TB, TILE_N, N, tiles_per_shard, nshards, compute_dtype):
    c4 = BLOCK_CHANNEL[-1]
    full_tiles = N // TILE_N            # global point tiles with no padded rows
    # Masking is only ever needed on global tiles >= full_tiles: the single
    # partial tile (N % TILE_N != 0) and/or clamped duplicate tiles on the last
    # shard.  If no such tile is reachable, emit no masking code at all.
    need_mask = (nshards * tiles_per_shard) > full_tiles

    def kernel(h0_ref,
               w2_ref, b2_ref, w3_ref, b3_ref, w4_ref, b4_ref,
               out_ref):
        n = pl.program_id(2)                       # point tile within this shard
        c1 = h0_ref.shape[-1]

        # (TB, TILE_N, 64) bf16 -> (rows, 64); no cast pass (input already bf16).
        h = h0_ref[...].reshape(TB * TILE_N, c1)

        # Layers 2-4.  Each line: MXU matmul (f32 acc) -> bias -> ReLU -> bf16,
        # kept as one fused expression so the f32 result is consumed in a
        # single pass instead of materializing both f32 and bf16 copies.
        h = jnp.maximum(
            jnp.dot(h, w2_ref[...], preferred_element_type=jnp.float32)
            + b2_ref[...], 0.0).astype(compute_dtype)            # (rows, 128)
        h = jnp.maximum(
            jnp.dot(h, w3_ref[...], preferred_element_type=jnp.float32)
            + b3_ref[...], 0.0).astype(compute_dtype)            # (rows, 256)
        h = (jnp.dot(h, w4_ref[...], preferred_element_type=jnp.float32)
             + b4_ref[...])                                      # (rows, 512) f32
        h = h.reshape(TB, TILE_N, c4)

        def accumulate(tile_max):
            # Running max across the innermost ("arbitrary") axis; the output
            # block stays resident in VMEM for the whole n sweep.
            block = tile_max.reshape(out_ref.shape)

            @pl.when(n == 0)
            def _():
                out_ref[...] = block

            @pl.when(n > 0)
            def _():
                out_ref[...] = jnp.maximum(out_ref[...], block)

        if not need_mask:
            accumulate(jnp.max(h, axis=1))          # == torch.max(x, 1)[0] per tile
        else:
            g_tile = pl.program_id(0) * tiles_per_shard + n       # global tile idx

            @pl.when(g_tile < full_tiles)                         # hot path: no mask
            def _():
                accumulate(jnp.max(h, axis=1))

            @pl.when(g_tile >= full_tiles)          # partial / duplicated tile only
            def _():
                # Rows beyond N must not contribute to the max.
                valid = N - g_tile * TILE_N                       # may be <= 0
                row = lax.broadcasted_iota(jnp.int32, (TB, TILE_N, 1), 1)
                hm = jnp.where(row < valid, h, -jnp.inf)
                accumulate(jnp.max(hm, axis=1))

    return kernel


@jax.jit
def pointnet_encoder_xyzrgb(x, params):
    """x: (B, N, C_in) float32.  params: dict of (in,out) weights, (1,out) biases."""
    B, N, _ = x.shape
    c1, _, _, c4 = BLOCK_CHANNEL
    cd = _COMPUTE_DTYPE

    cfg = _hw_config()
    TB, TILE_N = _choose_tiles(B, N, cfg["rows_target"])
    b_tiles = pl.cdiv(B, TB)
    total_tiles = pl.cdiv(N, TILE_N)

    # Multi-TensorCore parts only (v7x): shard the point axis across cores when
    # the batch axis alone cannot occupy them (small B).  Each shard produces a
    # partial max; the cross-shard max is a tiny XLA reduce below.
    nshards = 1
    if cfg["num_cores"] > 1 and b_tiles < cfg["num_cores"]:
        if total_tiles < cfg["num_cores"] and N >= 16:
            TILE_N = _fit(pl.cdiv(N, cfg["num_cores"]), N)
            total_tiles = pl.cdiv(N, TILE_N)
        nshards = min(cfg["num_cores"], total_tiles)
    tiles_per_shard = pl.cdiv(total_tiles, nshards)
    grid = (nshards, b_tiles, tiles_per_shard)

    # Layer 1 (C_in -> 64) + ReLU hoisted into XLA: negligible FLOPs, and it
    # hands the kernel a dense lane-friendly bf16 (B, N, 64) input slab.
    h0 = jnp.maximum(
        jnp.dot(x, params["w1"], preferred_element_type=jnp.float32)
        + params["b1"], 0.0).astype(cd)

    weight_args = (
        params["w2"].astype(cd), params["b2"],
        params["w3"].astype(cd), params["b3"],
        params["w4"].astype(cd), params["b4"],
    )

    def param_spec(arr):
        # Grid-invariant parameter: same full-array block every step (Pallas
        # skips the re-DMA when the block index does not change).
        nd = arr.ndim
        return pl.BlockSpec(arr.shape, lambda s, b, n, _nd=nd: (0,) * _nd)

    if nshards * tiles_per_shard == total_tiles:
        def n_index(s, n):
            return s * tiles_per_shard + n
    else:
        # The last shard owns fewer real tiles; clamp the DMA source.  The
        # duplicated tile is fully masked to -inf inside the kernel.
        def n_index(s, n):
            return jnp.minimum(s * tiles_per_shard + n, total_tiles - 1)

    in_specs = [pl.BlockSpec((TB, TILE_N, c1),
                             lambda s, b, n: (b, n_index(s, n), 0))]
    in_specs += [param_spec(a) for a in weight_args]
    out_spec = pl.BlockSpec((1, TB, c4), lambda s, b, n: (s, b, 0))

    partial_max = pl.pallas_call(
        _make_kernel(TB, TILE_N, N, tiles_per_shard, nshards, cd),
        out_shape=jax.ShapeDtypeStruct((nshards, B, c4), jnp.float32),
        grid_spec=pltpu.PrefetchScalarGridSpec(
            num_scalar_prefetch=0,
            grid=grid,
            in_specs=in_specs,
            out_specs=out_spec,
        ),
        compiler_params=pltpu.CompilerParams(
            dimension_semantics=("parallel", "parallel", "arbitrary"),
            vmem_limit_bytes=cfg["vmem_limit"],
        ),
    )(h0, *weight_args)

    pooled = jnp.max(partial_max, axis=0)              # (B, 512) == torch.max(x, 1)[0]

    # final_projection: Linear(512 -> out_channels) as one XLA GEMM on the
    # pooled features; the largest weight never occupies (double-buffered) VMEM.
    return pooled @ params["w5"] + params["b5"]


def init_params(key, in_channels, out_channels=1024):
    """Deterministic synthetic parameters (PyTorch-Linear-like uniform ranges)."""
    c1, c2, c3, c4 = BLOCK_CHANNEL
    dims = [(in_channels, c1), (c1, c2), (c2, c3), (c3, c4), (c4, out_channels)]
    params = {}
    keys = jax.random.split(key, 2 * len(dims))
    for i, (din, dout) in enumerate(dims):
        bound = 1.0 / (din ** 0.5)
        params[f"w{i + 1}"] = jax.random.uniform(
            keys[2 * i], (din, dout), jnp.float32, -bound, bound)
        params[f"b{i + 1}"] = jax.random.uniform(
            keys[2 * i + 1], (1, dout), jnp.float32, -bound, bound)
    return params


def reference_forward(x, params, matmul_dtype=jnp.float32):
    """Plain-JAX reference mirroring the PyTorch forward.  With
    matmul_dtype=bfloat16 it follows the kernel's exact cast points
    (layer 1 in f32, layers 2-4 with bf16 inputs / f32 accumulation)."""
    cd = matmul_dtype
    h = jnp.maximum(
        jnp.dot(x, params["w1"], preferred_element_type=jnp.float32)
        + params["b1"], 0.0).astype(cd)
    for k in ("2", "3"):
        h = jnp.maximum(
            jnp.dot(h, params["w" + k].astype(cd),
                    preferred_element_type=jnp.float32) + params["b" + k], 0.0
        ).astype(cd)
    h = jnp.dot(h, params["w4"].astype(cd),
                preferred_element_type=jnp.float32) + params["b4"]
    p = jnp.max(h, axis=1)                               # torch.max(x, 1)[0]
    return p @ params["w5"] + params["b5"]


if __name__ == "__main__":
    B, N, C_IN, OUT = 2, 128, 6, 1024                    # xyzrgb -> 6 input channels

    key = jax.random.PRNGKey(0)
    kx, kp = jax.random.split(key)
    x = jax.random.normal(kx, (B, N, C_IN), jnp.float32)
    params = init_params(kp, C_IN, OUT)

    out = jax.block_until_ready(pointnet_encoder_xyzrgb(x, params))
    assert out.shape == (B, OUT), out.shape
    assert bool(jnp.all(jnp.isfinite(out))), "non-finite output"

    # Tight check vs a reference using the kernel's bf16/f32-acc cast points.
    ref_matched = reference_forward(x, params, matmul_dtype=jnp.bfloat16)
    assert jnp.allclose(out, ref_matched, atol=1e-2, rtol=1e-2), \
        "mismatch vs bf16-matched reference"

    # Loose semantic check vs the full-f32 reference (guards weight/axis bugs).
    ref_f32 = reference_forward(x, params, matmul_dtype=jnp.float32)
    assert jnp.allclose(out, ref_f32, atol=2e-1, rtol=2e-1), \
        "mismatch vs f32 reference"

    print("KERNEL_OK")
</pallas_src>

<mosaic_0001>
module attributes {stable_mosaic.version = 11 : i64} {
  func.func @kernel(%arg0: i32, %arg1: i32, %arg2: i32, %arg3: memref<2x64x64xbf16, #tpu.memory_space<vmem>>, %arg4: memref<64x128xbf16, #tpu.memory_space<vmem>>, %arg5: memref<1x128xf32, #tpu.memory_space<vmem>>, %arg6: memref<128x256xbf16, #tpu.memory_space<vmem>>, %arg7: memref<1x256xf32, #tpu.memory_space<vmem>>, %arg8: memref<256x512xbf16, #tpu.memory_space<vmem>>, %arg9: memref<1x512xf32, #tpu.memory_space<vmem>>, %arg10: memref<1x2x512xf32, #tpu.memory_space<vmem>>) attributes {dimension_semantics = [#tpu.dimension_semantics<parallel>, #tpu.dimension_semantics<parallel>, #tpu.dimension_semantics<arbitrary>], iteration_bounds = array<i64: 2, 1, 1>, scalar_prefetch = 0 : i64, scratch_operands = 0 : i64, tpu.core_type = #tpu.core_type<tc>, window_params = [{transform_indices = @transform_0, window_bounds = array<i64: 2, 64, 64>}, {pipeline_mode = #tpu.pipeline_mode<synchronous>, transform_indices = @transform_1, window_bounds = array<i64: 64, 128>}, {pipeline_mode = #tpu.pipeline_mode<synchronous>, transform_indices = @transform_2, window_bounds = array<i64: 1, 128>}, {pipeline_mode = #tpu.pipeline_mode<synchronous>, transform_indices = @transform_3, window_bounds = array<i64: 128, 256>}, {pipeline_mode = #tpu.pipeline_mode<synchronous>, transform_indices = @transform_4, window_bounds = array<i64: 1, 256>}, {pipeline_mode = #tpu.pipeline_mode<synchronous>, transform_indices = @transform_5, window_bounds = array<i64: 256, 512>}, {pipeline_mode = #tpu.pipeline_mode<synchronous>, transform_indices = @transform_6, window_bounds = array<i64: 1, 512>}, {transform_indices = @transform_7, window_bounds = array<i64: 1, 2, 512>}]} {
    %c0 = arith.constant 0 : index
    %c0_0 = arith.constant 0 : index
    %c0_1 = arith.constant 0 : index
    %0 = vector.load %arg3[%c0, %c0_0, %c0_1] : memref<2x64x64xbf16, #tpu.memory_space<vmem>>, vector<2x64x64xbf16>
    %1 = vector.shape_cast %0 : vector<2x64x64xbf16> to vector<128x64xbf16>
    %c0_2 = arith.constant 0 : index
    %c0_3 = arith.constant 0 : index
    %2 = vector.load %arg4[%c0_2, %c0_3] : memref<64x128xbf16, #tpu.memory_space<vmem>>, vector<64x128xbf16>
    %cst = arith.constant dense<0.000000e+00> : vector<128x128xf32>
    %3 = tpu.matmul %1, %2, %cst {dimension_numbers = #tpu.dot_dimension_numbers<[1], [0], [0], [1], [0, 0, 1, 1], [], []>} : vector<128x64xbf16>, vector<64x128xbf16>, vector<128x128xf32> -> vector<128x128xf32>
    %c0_4 = arith.constant 0 : index
    %c0_5 = arith.constant 0 : index
    %4 = vector.load %arg5[%c0_4, %c0_5] : memref<1x128xf32, #tpu.memory_space<vmem>>, vector<1x128xf32>
    %5 = vector.broadcast %4 : vector<1x128xf32> to vector<128x128xf32>
    %6 = arith.addf %3, %5 : vector<128x128xf32>
    %cst_6 = arith.constant 0.000000e+00 : f32
    %7 = vector.broadcast %cst_6 : f32 to vector<128x128xf32>
    %8 = arith.maximumf %6, %7 : vector<128x128xf32>
    %9 = arith.truncf %8 : vector<128x128xf32> to vector<128x128xbf16>
    %c0_7 = arith.constant 0 : index
    %c0_8 = arith.constant 0 : index
    %10 = vector.load %arg6[%c0_7, %c0_8] : memref<128x256xbf16, #tpu.memory_space<vmem>>, vector<128x256xbf16>
    %cst_9 = arith.constant dense<0.000000e+00> : vector<128x256xf32>
    %11 = tpu.matmul %9, %10, %cst_9 {dimension_numbers = #tpu.dot_dimension_numbers<[1], [0], [0], [1], [0, 0, 1, 1], [], []>} : vector<128x128xbf16>, vector<128x256xbf16>, vector<128x256xf32> -> vector<128x256xf32>
    %c0_10 = arith.constant 0 : index
    %c0_11 = arith.constant 0 : index
    %12 = vector.load %arg7[%c0_10, %c0_11] : memref<1x256xf32, #tpu.memory_space<vmem>>, vector<1x256xf32>
    %13 = vector.broadcast %12 : vector<1x256xf32> to vector<128x256xf32>
    %14 = arith.addf %11, %13 : vector<128x256xf32>
    %cst_12 = arith.constant 0.000000e+00 : f32
    %15 = vector.broadcast %cst_12 : f32 to vector<128x256xf32>
    %16 = arith.maximumf %14, %15 : vector<128x256xf32>
    %17 = arith.truncf %16 : vector<128x256xf32> to vector<128x256xbf16>
    %c0_13 = arith.constant 0 : index
    %c0_14 = arith.constant 0 : index
    %18 = vector.load %arg8[%c0_13, %c0_14] : memref<256x512xbf16, #tpu.memory_space<vmem>>, vector<256x512xbf16>
    %cst_15 = arith.constant dense<0.000000e+00> : vector<128x512xf32>
    %19 = tpu.matmul %17, %18, %cst_15 {dimension_numbers = #tpu.dot_dimension_numbers<[1], [0], [0], [1], [0, 0, 1, 1], [], []>} : vector<128x256xbf16>, vector<256x512xbf16>, vector<128x512xf32> -> vector<128x512xf32>
    %c0_16 = arith.constant 0 : index
    %c0_17 = arith.constant 0 : index
    %20 = vector.load %arg9[%c0_16, %c0_17] : memref<1x512xf32, #tpu.memory_space<vmem>>, vector<1x512xf32>
    %21 = vector.broadcast %20 : vector<1x512xf32> to vector<128x512xf32>
    %22 = arith.addf %19, %21 : vector<128x512xf32>
    %23 = vector.shape_cast %22 : vector<128x512xf32> to vector<2x64x512xf32>
    %cst_18 = arith.constant dense<0xFF800000> : vector<2x512xf32>
    %24 = vector.multi_reduction <maximumf>, %23, %cst_18 [1] : vector<2x64x512xf32> to vector<2x512xf32>
    %25 = vector.shape_cast %24 : vector<2x512xf32> to vector<1x2x512xf32>
    %c0_i32 = arith.constant 0 : i32
    %26 = arith.cmpi eq, %arg2, %c0_i32 : i32
    %27 = arith.extui %26 : i1 to i32
    %c0_i32_19 = arith.constant 0 : i32
    %28 = arith.cmpi ne, %27, %c0_i32_19 : i32
    scf.if %28 {
      %c0_22 = arith.constant 0 : index
      %c0_23 = arith.constant 0 : index
      %c0_24 = arith.constant 0 : index
      %32 = vector.load %arg10[%c0_22, %c0_23, %c0_24] : memref<1x2x512xf32, #tpu.memory_space<vmem>>, vector<1x2x512xf32>
      tpu.vector_store %arg10[%c0_22, %c0_23, %c0_24], %25 {strides = array<i32>} : memref<1x2x512xf32, #tpu.memory_space<vmem>>, vector<1x2x512xf32>,
    } else {
    }
    %c0_i32_20 = arith.constant 0 : i32
    %29 = arith.cmpi sgt, %arg2, %c0_i32_20 : i32
    %30 = arith.extui %29 : i1 to i32
    %c0_i32_21 = arith.constant 0 : i32
    %31 = arith.cmpi ne, %30, %c0_i32_21 : i32
    scf.if %31 {
      %c0_22 = arith.constant 0 : index
      %c0_23 = arith.constant 0 : index
      %c0_24 = arith.constant 0 : index
      %32 = vector.load %arg10[%c0_22, %c0_23, %c0_24] : memref<1x2x512xf32, #tpu.memory_space<vmem>>, vector<1x2x512xf32>
      %33 = arith.maximumf %32, %25 : vector<1x2x512xf32>
      %c0_25 = arith.constant 0 : index
      %c0_26 = arith.constant 0 : index
      %c0_27 = arith.constant 0 : index
      %34 = vector.load %arg10[%c0_25, %c0_26, %c0_27] : memref<1x2x512xf32, #tpu.memory_space<vmem>>, vector<1x2x512xf32>
      tpu.vector_store %arg10[%c0_25, %c0_26, %c0_27], %33 {strides = array<i32>} : memref<1x2x512xf32, #tpu.memory_space<vmem>>, vector<1x2x512xf32>,
    } else {
    }
    return
  }
  func.func @transform_0(%arg0: i32, %arg1: i32, %arg2: i32) -> (i32, i32, i32) {
    %c1_i32 = arith.constant 1 : i32
    %0 = arith.muli %arg0, %c1_i32 : i32
    %1 = arith.addi %0, %arg2 : i32
    %c0_i32 = arith.constant 0 : i32
    %c0_i32_0 = arith.constant 0 : i32
    return %arg1, %1, %c0_i32 : i32, i32, i32
  }
  func.func @transform_1(%arg0: i32, %arg1: i32, %arg2: i32) -> (i32, i32) {
    %c0_i32 = arith.constant 0 : i32
    %c0_i32_0 = arith.constant 0 : i32
    %c0_i32_1 = arith.constant 0 : i32
    return %c0_i32, %c0_i32_0 : i32, i32
  }
  func.func @transform_2(%arg0: i32, %arg1: i32, %arg2: i32) -> (i32, i32) {
    %c0_i32 = arith.constant 0 : i32
    %c0_i32_0 = arith.constant 0 : i32
    %c0_i32_1 = arith.constant 0 : i32
    return %c0_i32, %c0_i32_0 : i32, i32
  }
  func.func @transform_3(%arg0: i32, %arg1: i32, %arg2: i32) -> (i32, i32) {
    %c0_i32 = arith.constant 0 : i32
    %c0_i32_0 = arith.constant 0 : i32
    %c0_i32_1 = arith.constant 0 : i32
    return %c0_i32, %c0_i32_0 : i32, i32
  }
  func.func @transform_4(%arg0: i32, %arg1: i32, %arg2: i32) -> (i32, i32) {
    %c0_i32 = arith.constant 0 : i32
    %c0_i32_0 = arith.constant 0 : i32
    %c0_i32_1 = arith.constant 0 : i32
    return %c0_i32, %c0_i32_0 : i32, i32
  }
  func.func @transform_5(%arg0: i32, %arg1: i32, %arg2: i32) -> (i32, i32) {
    %c0_i32 = arith.constant 0 : i32
    %c0_i32_0 = arith.constant 0 : i32
    %c0_i32_1 = arith.constant 0 : i32
    return %c0_i32, %c0_i32_0 : i32, i32
  }
  func.func @transform_6(%arg0: i32, %arg1: i32, %arg2: i32) -> (i32, i32) {
    %c0_i32 = arith.constant 0 : i32
    %c0_i32_0 = arith.constant 0 : i32
    %c0_i32_1 = arith.constant 0 : i32
    return %c0_i32, %c0_i32_0 : i32, i32
  }
  func.func @transform_7(%arg0: i32, %arg1: i32, %arg2: i32) -> (i32, i32, i32) {
    %c0_i32 = arith.constant 0 : i32
    %c0_i32_0 = arith.constant 0 : i32
    return %arg0, %arg1, %c0_i32 : i32, i32, i32
  }
}

</mosaic_0001>

<llo_original>
// kernel: pointnet_encoder_xyzrgb.1
$region0: #{pointnet_encoder_xyzrgb.1}
  #allocation0 [shape = 'u32[]', space=smem, size = 0x4, offset = 0x4, fixed_abs, tag = 'smem constant byte address 0x4 - core index']
  #allocation1 [shape = 'u32[144,128]{1,0:T(1,128)}', space=vmem, size = 0x12000, scoped, tag = 'internal scratch']
  %s0 = inlined_call_operand.vmem [shape: bf16[2,128,64], index: 0, kind: input, shape index: {}]
  %s1 = inlined_call_operand.vmem [shape: bf16[64,128], index: 1, kind: input, shape index: {}]
  %s2 = inlined_call_operand.hbm [shape: f32[1,128], index: 2, kind: input, shape index: {}]
  %s3 = inlined_call_operand.vmem [shape: bf16[128,256], index: 3, kind: input, shape index: {}]
  %s4 = inlined_call_operand.hbm [shape: f32[1,256], index: 4, kind: input, shape index: {}]
  %s5 = inlined_call_operand.vmem [shape: bf16[256,512], index: 5, kind: input, shape index: {}]
  %s6 = inlined_call_operand.hbm [shape: f32[1,512], index: 6, kind: input, shape index: {}]
  %s7 = inlined_call_operand.vmem [shape: f32[2,2,512], index: 7, kind: output, shape index: {}]
  %s8 = sld [smem:[#allocation0]]
  $region122: #{pointnet_encoder_xyzrgb.1} parent=0
    _
  %s10 = ssub.s32 1, %s8
  %s11 = scalar_select 0, %s10, %s8
  $region1: #{pointnet_encoder_xyzrgb.1} parent=0
    #allocation2 [shape = 'u8[65536]{0}', space=vmem, size = 0x10000, scoped, tag = 'input window, operand 0']
    #allocation3 [shape = 'u8[512]{0}', space=vmem, size = 0x400, scoped, tag = 'input window, operand 2, single buffered']
    #allocation4 [shape = 's32[2]{0}', space=sflag, size = 0x8, scoped, tag = 'scoped memory for pointnet_encoder_xyzrgb.1']
    #allocation5 [shape = 'u8[1024]{0}', space=vmem, size = 0x400, scoped, tag = 'input window, operand 4, single buffered']
    #allocation6 [shape = 's32[1]{0}', space=sflag, size = 0x4, scoped, tag = 'scoped memory for pointnet_encoder_xyzrgb.1']
    #allocation7 [shape = 'u8[2048]{0}', space=vmem, size = 0x800, scoped, tag = 'input window, operand 6, single buffered']
    %12 = vsyncpa [#allocation4], 0
    %13 = vsyncpa [#allocation6], 0
    loop: start=0, step=1, limit=4
    $region2: #{pointnet_encoder_xyzrgb.1} parent=1 // loop_pre_header
      _
    $region3: #{pointnet_encoder_xyzrgb.1} parent=1 // loop_header
      %s15 = sphi 0, %s19
      %p16 = scmp.ge.s32.totalorder %s15, 4
      %s22 = sphi 0, %s41
      %s23 = sphi 0, %s37
      %s24 = sphi 0, %s33
      %s25 = sphi 0, %s22
      %s26 = sphi 0, %s23
      %s27 = sphi 0, %s24
      %s28 = sphi 0, %s25
      %s29 = sphi 0, %s26
      %s30 = sphi 0, %s27
      %s48 = sphi 0, %s50
      %s51 = sphi 0, %s48
      %s52 = sphi 0, %s51
      %s68 = sphi 0, %s52
      %s72 = sphi 0, %s72
      %s74 = sphi 0, %s72
      %s75 = sphi 0, %s74
      %s89 = sphi 0, %s75
      %s93 = sphi 0, %s93
      %s95 = sphi 0, %s93
      %s96 = sphi 0, %s95
      %s110 = sphi 0, %s96
      %s114 = sphi 0, %s114
      %s116 = sphi 0, %s114
      %s117 = sphi 0, %s116
      %s131 = sphi 0, %s117
      %s135 = sphi 0, %s135
      %s137 = sphi 0, %s135
      %s138 = sphi 0, %s137
      %s152 = sphi 0, %s138
      %s156 = sphi 0, %s156
      %s158 = sphi 0, %s156
      %s159 = sphi 0, %s158
      %s173 = sphi 0, %s159
      %s177 = sphi 0, %s177
      %s179 = sphi 0, %s177
      %s180 = sphi 0, %s179
      %s194 = sphi 0, %s180
      %s202 = sphi 0, %s204
      %s205 = sphi 0, %s202
      %s206 = sphi 0, %s205
      %s222 = sphi 0, %s206
    $region4: #{pointnet_encoder_xyzrgb.1} parent=1 // loop_header_branch
      %18 = sbr.rel (%p16) target = $region8
    $region5: #{pointnet_encoder_xyzrgb.1} parent=1 // loop_body
      %s20 = ssub.s32 %s15, 1
      %s21 = ssub.s32 %s15, 2
      %s31 = sadd.s32 1, %s24
      %p32 = scmp.ge.s32.totalorder %s31, 1
      %s33 = scalar_select %p32, 0, %s31
      %s34 = sadd.s32 1, %s23
      %s35 = scalar_select %p32, %s34, %s23
      %p36 = scmp.ge.s32.totalorder %s35, 1
      %s37 = scalar_select %p36, 0, %s35
      %s38 = sadd.s32 1, %s22
      %s39 = scalar_select %p36, %s38, %s22
      %p40 = scmp.ge.s32.totalorder %s39, 2
      %s41 = scalar_select %p40, 0, %s39
      %s42 = sadd.s32 %s22, %s24
      %s43 = sadd.s32 %s41, %s33
      %s44 = ssub.s32 %s23, %s37
      %s45 = ssub.s32 %s42, %s43
      %s46 = sor.u32 %s44, %s45
      %p47 = scmp.eq.s32.totalorder %s46, 0
      %s49 = sadd.s32 %s48, 1
      %s50 = scalar_select %p47, %s48, %s49
      %p53 = pneg %p47
      %p54 = scmp.eq.s32.totalorder %s15, 1
      %p55 = por %p53, %p54
      %p56 = scmp.ne.s32.totalorder %s48, %s51
      %p57 = scmp.eq.s32.totalorder %s15, 0
      %p58 = por %p56, %p57
      %p59 = scmp.ne.s32.totalorder %s48, %s51
      %p60 = scmp.eq.s32.totalorder %s20, 1
      %p61 = por %p59, %p60
      %p62 = scmp.ne.s32.totalorder %s51, %s52
      %p63 = scmp.eq.s32.totalorder %s20, 0
      %p64 = por %p62, %p63
      %p65 = scmp.ne.s32.totalorder %s51, %s52
      %p66 = scmp.eq.s32.totalorder %s21, 1
      %p67 = por %p65, %p66
      %p69 = scmp.ne.s32.totalorder %s52, %s68
      %p70 = scmp.eq.s32.totalorder %s21, 0
      %p71 = por %p69, %p70
      %s73 = sadd.s32 %s72, 1
      %p76 = scmp.eq.s32.totalorder %s15, 1
      %p77 = scmp.ne.s32.totalorder %s72, %s74
      %p78 = scmp.eq.s32.totalorder %s15, 0
      %p79 = por %p77, %p78
      %p80 = scmp.ne.s32.totalorder %s72, %s74
      %p81 = scmp.eq.s32.totalorder %s20, 1
      %p82 = por %p80, %p81
      %p83 = scmp.ne.s32.totalorder %s74, %s75
      %p84 = scmp.eq.s32.totalorder %s20, 0
      %p85 = por %p83, %p84
      %p86 = scmp.ne.s32.totalorder %s74, %s75
      %p87 = scmp.eq.s32.totalorder %s21, 1
      %p88 = por %p86, %p87
      %p90 = scmp.ne.s32.totalorder %s75, %s89
      %p91 = scmp.eq.s32.totalorder %s21, 0
      %p92 = por %p90, %p91
      %s94 = sadd.s32 %s93, 1
      %p97 = scmp.eq.s32.totalorder %s15, 1
      %p98 = scmp.ne.s32.totalorder %s93, %s95
      %p99 = scmp.eq.s32.totalorder %s15, 0
      %p100 = por %p98, %p99
      %p101 = scmp.ne.s32.totalorder %s93, %s95
      %p102 = scmp.eq.s32.totalorder %s20, 1
      %p103 = por %p101, %p102
      %p104 = scmp.ne.s32.totalorder %s95, %s96
      %p105 = scmp.eq.s32.totalorder %s20, 0
      %p106 = por %p104, %p105
      %p107 = scmp.ne.s32.totalorder %s95, %s96
      %p108 = scmp.eq.s32.totalorder %s21, 1
      %p109 = por %p107, %p108
      %p111 = scmp.ne.s32.totalorder %s96, %s110
      %p112 = scmp.eq.s32.totalorder %s21, 0
      %p113 = por %p111, %p112
      %s115 = sadd.s32 %s114, 1
      %p118 = scmp.eq.s32.totalorder %s15, 1
      %p119 = scmp.ne.s32.totalorder %s114, %s116
      %p120 = scmp.eq.s32.totalorder %s15, 0
      %p121 = por %p119, %p120
      %p122 = scmp.ne.s32.totalorder %s114, %s116
      %p123 = scmp.eq.s32.totalorder %s20, 1
      %p124 = por %p122, %p123
      %p125 = scmp.ne.s32.totalorder %s116, %s117
      %p126 = scmp.eq.s32.totalorder %s20, 0
      %p127 = por %p125, %p126
      %p128 = scmp.ne.s32.totalorder %s116, %s117
      %p129 = scmp.eq.s32.totalorder %s21, 1
      %p130 = por %p128, %p129
      %p132 = scmp.ne.s32.totalorder %s117, %s131
      %p133 = scmp.eq.s32.totalorder %s21, 0
      %p134 = por %p132, %p133
      %s136 = sadd.s32 %s135, 1
      %p139 = scmp.eq.s32.totalorder %s15, 1
      %p140 = scmp.ne.s32.totalorder %s135, %s137
      %p141 = scmp.eq.s32.totalorder %s15, 0
      %p142 = por %p140, %p141
      %p143 = scmp.ne.s32.totalorder %s135, %s137
      %p144 = scmp.eq.s32.totalorder %s20, 1
      %p145 = por %p143, %p144
      %p146 = scmp.ne.s32.totalorder %s137, %s138
      %p147 = scmp.eq.s32.totalorder %s20, 0
      %p148 = por %p146, %p147
      %p149 = scmp.ne.s32.totalorder %s137, %s138
      %p150 = scmp.eq.s32.totalorder %s21, 1
      %p151 = por %p149, %p150
      %p153 = scmp.ne.s32.totalorder %s138, %s152
      %p154 = scmp.eq.s32.totalorder %s21, 0
      %p155 = por %p153, %p154
      %s157 = sadd.s32 %s156, 1
      %p160 = scmp.eq.s32.totalorder %s15, 1
      %p161 = scmp.ne.s32.totalorder %s156, %s158
      %p162 = scmp.eq.s32.totalorder %s15, 0
      %p163 = por %p161, %p162
      %p164 = scmp.ne.s32.totalorder %s156, %s158
      %p165 = scmp.eq.s32.totalorder %s20, 1
      %p166 = por %p164, %p165
      %p167 = scmp.ne.s32.totalorder %s158, %s159
      %p168 = scmp.eq.s32.totalorder %s20, 0
      %p169 = por %p167, %p168
      %p170 = scmp.ne.s32.totalorder %s158, %s159
      %p171 = scmp.eq.s32.totalorder %s21, 1
      %p172 = por %p170, %p171
      %p174 = scmp.ne.s32.totalorder %s159, %s173
      %p175 = scmp.eq.s32.totalorder %s21, 0
      %p176 = por %p174, %p175
      %s178 = sadd.s32 %s177, 1
      %p181 = scmp.eq.s32.totalorder %s15, 1
      %p182 = scmp.ne.s32.totalorder %s177, %s179
      %p183 = scmp.eq.s32.totalorder %s15, 0
      %p184 = por %p182, %p183
      %p185 = scmp.ne.s32.totalorder %s177, %s179
      %p186 = scmp.eq.s32.totalorder %s20, 1
      %p187 = por %p185, %p186
      %p188 = scmp.ne.s32.totalorder %s179, %s180
      %p189 = scmp.eq.s32.totalorder %s20, 0
      %p190 = por %p188, %p189
      %p191 = scmp.ne.s32.totalorder %s179, %s180
      %p192 = scmp.eq.s32.totalorder %s21, 1
      %p193 = por %p191, %p192
      %p195 = scmp.ne.s32.totalorder %s180, %s194
      %p196 = scmp.eq.s32.totalorder %s21, 0
      %p197 = por %p195, %p196
      %s198 = ssub.s32 %s22, %s41
      %s199 = ssub.s32 %s23, %s37
      %s200 = sor.u32 %s198, %s199
      %p201 = scmp.eq.s32.totalorder %s200, 0
      %s203 = sadd.s32 %s202, 1
      %s204 = scalar_select %p201, %s202, %s203
      %p207 = pneg %p201
      %p208 = scmp.eq.s32.totalorder %s15, 1
      %p209 = por %p207, %p208
      %p210 = scmp.ne.s32.totalorder %s202, %s205
      %p211 = scmp.eq.s32.totalorder %s15, 0
      %p212 = por %p210, %p211
      %p213 = scmp.ne.s32.totalorder %s202, %s205
      %p214 = scmp.eq.s32.totalorder %s20, 1
      %p215 = por %p213, %p214
      %p216 = scmp.ne.s32.totalorder %s205, %s206
      %p217 = scmp.eq.s32.totalorder %s20, 0
      %p218 = por %p216, %p217
      %p219 = scmp.ne.s32.totalorder %s205, %s206
      %p220 = scmp.eq.s32.totalorder %s21, 1
      %p221 = por %p219, %p220
      %p223 = scmp.ne.s32.totalorder %s206, %s222
      %p224 = scmp.eq.s32.totalorder %s21, 0
      %p225 = por %p223, %p224
      %p226 = scmp.le.s32.totalorder 1, %s15
      %p227 = scmp.lt.s32.totalorder %s15, 3
      %p228 = pnand %p226, %p227
      %p229 = pneg %p228
      // Predicated region
      $region9: #{pointnet_encoder_xyzrgb.1} parent=5 // pred_check
        _
      $region10: #{pointnet_encoder_xyzrgb.1} parent=5 // pred_check_branch
        %231 = sbr.rel (%p228) target = $region12
      $region11: #{pointnet_encoder_xyzrgb.1} parent=5 // pred_region
        %s232 = ssub.s32 %s15, 1
        // Predicated region
        $region13: #{pointnet_encoder_xyzrgb.1} parent=11 // pred_check
          %p233 = pneg %p85
        $region14: #{pointnet_encoder_xyzrgb.1} parent=11 // pred_check_branch
          %235 = sbr.rel (%p233) target = $region16
        $region15: #{pointnet_encoder_xyzrgb.1} parent=11 // pred_region
          _
        $region16: #{pointnet_encoder_xyzrgb.1} parent=11 // pred_fallthru
          _
        // Predicated region
        $region17: #{pointnet_encoder_xyzrgb.1} parent=11 // pred_check
          %p236 = pneg %p106
        $region18: #{pointnet_encoder_xyzrgb.1} parent=11 // pred_check_branch
          %238 = sbr.rel (%p236) target = $region20
        $region19: #{pointnet_encoder_xyzrgb.1} parent=11 // pred_region
          %s240 = ssub.s32 16, 16
          %241 = vsyncadd [#allocation4], %s240
          %s243 = sshll.u32 [#allocation3], 4
          %s244 = int_to_ptr.vmem [resolvable:$true] %s243
          %246 = dma.hbm_to_vmem [thread:$0]  %s2, 16, %s244, [#allocation4]
        $region20: #{pointnet_encoder_xyzrgb.1} parent=11 // pred_fallthru
          _
        // Predicated region
        $region21: #{pointnet_encoder_xyzrgb.1} parent=11 // pred_check
          %p247 = pneg %p127
        $region22: #{pointnet_encoder_xyzrgb.1} parent=11 // pred_check_branch
          %249 = sbr.rel (%p247) target = $region24
        $region23: #{pointnet_encoder_xyzrgb.1} parent=11 // pred_region
          _
        $region24: #{pointnet_encoder_xyzrgb.1} parent=11 // pred_fallthru
          _
        // Predicated region
        $region25: #{pointnet_encoder_xyzrgb.1} parent=11 // pred_check
          %p250 = pneg %p148
        $region26: #{pointnet_encoder_xyzrgb.1} parent=11 // pred_check_branch
          %252 = sbr.rel (%p250) target = $region28
        $region27: #{pointnet_encoder_xyzrgb.1} parent=11 // pred_region
          %s254 = ssub.s32 32, 32
          %255 = vsyncadd [#allocation6], %s254
          %s257 = sshll.u32 [#allocation5], 4
          %s258 = int_to_ptr.vmem [resolvable:$true] %s257
          %260 = dma.hbm_to_vmem [thread:$0]  %s4, 32, %s258, [#allocation6]
        $region28: #{pointnet_encoder_xyzrgb.1} parent=11 // pred_fallthru
          _
        // Predicated region
        $region29: #{pointnet_encoder_xyzrgb.1} parent=11 // pred_check
          %p261 = pneg %p169
        $region30: #{pointnet_encoder_xyzrgb.1} parent=11 // pred_check_branch
          %263 = sbr.rel (%p261) target = $region32
        $region31: #{pointnet_encoder_xyzrgb.1} parent=11 // pred_region
          _
        $region32: #{pointnet_encoder_xyzrgb.1} parent=11 // pred_fallthru
          _
        // Predicated region
        $region33: #{pointnet_encoder_xyzrgb.1} parent=11 // pred_check
          %p264 = pneg %p190
        $region34: #{pointnet_encoder_xyzrgb.1} parent=11 // pred_check_branch
          %266 = sbr.rel (%p264) target = $region36
        $region35: #{pointnet_encoder_xyzrgb.1} parent=11 // pred_region
          %s268 = ssub.s32 64, 64
          %269 = vsyncadd [#allocation6], %s268
          %s271 = sshll.u32 [#allocation7], 4
          %s272 = int_to_ptr.vmem [resolvable:$true] %s271
          %274 = dma.hbm_to_vmem [thread:$0]  %s6, 64, %s272, [#allocation6]
        $region36: #{pointnet_encoder_xyzrgb.1} parent=11 // pred_fallthru
          _
      $region12: #{pointnet_encoder_xyzrgb.1} parent=5 // pred_fallthru
        _
      %p275 = scmp.lt.s32.totalorder %s15, 2
      // Predicated region
      $region37: #{pointnet_encoder_xyzrgb.1} parent=5 // pred_check
        %p276 = pneg %p275
      $region38: #{pointnet_encoder_xyzrgb.1} parent=5 // pred_check_branch
        %278 = sbr.rel (%p276) target = $region40
      $region39: #{pointnet_encoder_xyzrgb.1} parent=5 // pred_region
        // Predicated region
        $region41: #{pointnet_encoder_xyzrgb.1} parent=39 // pred_check
          %p279 = pneg %p58
        $region42: #{pointnet_encoder_xyzrgb.1} parent=39 // pred_check_branch
          %281 = sbr.rel (%p279) target = $region44
        $region43: #{pointnet_encoder_xyzrgb.1} parent=39 // pred_region
          %s282 = sand.u32 %s48, 1
          %s283 = sand.u32 %s48, 1
          %s284 = smul.addr %s283, 64
          %s285 = scalar_lea.vmem [#allocation2], %s284
          %s286 = sadd.s32 %s22, %s24
          %s287 = smul.u32 2, %s23
          %s288 = smul.u32 8, %s286
          %s289 = smul.addr %s287, 16
          %s290 = sadd.s32 %s288, %s289
          %s291 = smul.addr %s290, 4
          %s292 = scalar_lea.vmem %s0, %s291
          // Predicated region
          $region45: #{pointnet_encoder_xyzrgb.1} parent=43 // pred_check
            _
          $region46: #{pointnet_encoder_xyzrgb.1} parent=43 // pred_check_branch
            %294 = sbr.rel (0) target = $region48
          $region47: #{pointnet_encoder_xyzrgb.1} parent=43 // pred_region
            // Predicated region
            $region49: #{pointnet_encoder_xyzrgb.1} parent=47 // pred_check
              _
            $region50: #{pointnet_encoder_xyzrgb.1} parent=47 // pred_check_branch
              %296 = sbr.rel target = $region52
            $region51: #{pointnet_encoder_xyzrgb.1} parent=47 // pred_region
              // Predicated region
              $region64: #{pointnet_encoder_xyzrgb.1} parent=51 // pred_check
                _
              $region65: #{pointnet_encoder_xyzrgb.1} parent=51 // pred_check_branch
                %341 = sbr.rel (0) target = $region67
              $region66: #{pointnet_encoder_xyzrgb.1} parent=51 // pred_region
                loop: start=0, step=1, limit=1
                $region68: #{pointnet_encoder_xyzrgb.1} parent=66 // loop_pre_header
                  _
                $region69: #{pointnet_encoder_xyzrgb.1} parent=66 // loop_header
                  %s343 = sphi 0, %s347
                  %p344 = scmp.ge.s32.totalorder %s343, 1
                  %s348 = sphi %s292, %s292
                  %s349 = sphi %s285, %s285
                $region70: #{pointnet_encoder_xyzrgb.1} parent=66 // loop_header_branch
                  %346 = sbr.rel (%p344) target = $region74
                $region71: #{pointnet_encoder_xyzrgb.1} parent=66 // loop_body
                  _
                $region72: #{pointnet_encoder_xyzrgb.1} parent=66 // loop_footer
                  %s347 = sadd.s32 1, %s343
                $region73: #{pointnet_encoder_xyzrgb.1} parent=66 // loop_footer_branch
                  %342 = sbr.rel target = $region69
                $region74: #{pointnet_encoder_xyzrgb.1} parent=66 // loop_exit
                  _
                loop: start=0, step=1, limit=1
                $region75: #{pointnet_encoder_xyzrgb.1} parent=66 // loop_pre_header
                  _
                $region76: #{pointnet_encoder_xyzrgb.1} parent=66 // loop_header
                  %s352 = sphi 0, %s356
                  %p353 = scmp.ge.s32.totalorder %s352, 1
                  %s357 = sphi %s292, %s292
                  %s358 = sphi %s285, %s285
                $region77: #{pointnet_encoder_xyzrgb.1} parent=66 // loop_header_branch
                  %355 = sbr.rel (%p353) target = $region81
                $region78: #{pointnet_encoder_xyzrgb.1} parent=66 // loop_body
                  %v359 = vld [vmem:[%s357] sm:$0xf]
                  %360 = vst [vmem:[%s358] sm:$0xf] %v359
                  %v361 = vld [vmem:[%s357 + $0x4] sm:$0xf]
                  %362 = vst [vmem:[%s358 + $0x4] sm:$0xf] %v361
                  %v363 = vld [vmem:[%s357 + $0x8] sm:$0xf]
                  %364 = vst [vmem:[%s358 + $0x8] sm:$0xf] %v363
                  %v365 = vld [vmem:[%s357 + $0xc] sm:$0xf]
                  %366 = vst [vmem:[%s358 + $0xc] sm:$0xf] %v365
                  %v367 = vld [vmem:[%s357 + $0x10] sm:$0xf]
                  %368 = vst [vmem:[%s358 + $0x10] sm:$0xf] %v367
                  %v369 = vld [vmem:[%s357 + $0x14] sm:$0xf]
                  %370 = vst [vmem:[%s358 + $0x14] sm:$0xf] %v369
                  %v371 = vld [vmem:[%s357 + $0x18] sm:$0xf]
                  %372 = vst [vmem:[%s358 + $0x18] sm:$0xf] %v371
                  %v373 = vld [vmem:[%s357 + $0x1c] sm:$0xf]
                  %374 = vst [vmem:[%s358 + $0x1c] sm:$0xf] %v373
                  %v375 = vld [vmem:[%s357 + $0x40] sm:$0xf]
                  %376 = vst [vmem:[%s358 + $0x20] sm:$0xf] %v375
                  %v377 = vld [vmem:[%s357 + $0x44] sm:$0xf]
                  %378 = vst [vmem:[%s358 + $0x24] sm:$0xf] %v377
                  %v379 = vld [vmem:[%s357 + $0x48] sm:$0xf]
                  %380 = vst [vmem:[%s358 + $0x28] sm:$0xf] %v379
                  %v381 = vld [vmem:[%s357 + $0x4c] sm:$0xf]
                  %382 = vst [vmem:[%s358 + $0x2c] sm:$0xf] %v381
                  %v383 = vld [vmem:[%s357 + $0x50] sm:$0xf]
                  %384 = vst [vmem:[%s358 + $0x30] sm:$0xf] %v383
                  %v385 = vld [vmem:[%s357 + $0x54] sm:$0xf]
                  %386 = vst [vmem:[%s358 + $0x34] sm:$0xf] %v385
                  %v387 = vld [vmem:[%s357 + $0x58] sm:$0xf]
                  %388 = vst [vmem:[%s358 + $0x38] sm:$0xf] %v387
                  %v389 = vld [vmem:[%s357 + $0x5c] sm:$0xf]
                  %390 = vst [vmem:[%s358 + $0x3c] sm:$0xf] %v389
                $region79: #{pointnet_encoder_xyzrgb.1} parent=66 // loop_footer
                  %s356 = sadd.s32 1, %s352
                $region80: #{pointnet_encoder_xyzrgb.1} parent=66 // loop_footer_branch
                  %351 = sbr.rel target = $region76
                $region81: #{pointnet_encoder_xyzrgb.1} parent=66 // loop_exit
                  _
              $region67: #{pointnet_encoder_xyzrgb.1} parent=51 // pred_fallthru
                _
            $region52: #{pointnet_encoder_xyzrgb.1} parent=47 // pred_fallthru
              _
            // Predicated region
            $region53: #{pointnet_encoder_xyzrgb.1} parent=47 // pred_check
              _
            $region54: #{pointnet_encoder_xyzrgb.1} parent=47 // pred_check_branch
              %298 = sbr.rel (0) target = $region56
            $region55: #{pointnet_encoder_xyzrgb.1} parent=47 // pred_region
              loop: start=0, step=1, limit=1
              $region57: #{pointnet_encoder_xyzrgb.1} parent=55 // loop_pre_header
                _
              $region58: #{pointnet_encoder_xyzrgb.1} parent=55 // loop_header
                %s301 = sphi 0, %s305
                %p302 = scmp.ge.s32.totalorder %s301, 1
                %s306 = sphi %s292, %s292
                %s307 = sphi %s285, %s285
              $region59: #{pointnet_encoder_xyzrgb.1} parent=55 // loop_header_branch
                %304 = sbr.rel (%p302) target = $region63
              $region60: #{pointnet_encoder_xyzrgb.1} parent=55 // loop_body
                %v308 = vld [vmem:[%s306] sm:$0xf]
                %309 = vst [vmem:[%s307] sm:$0xf] %v308
                %v310 = vld [vmem:[%s306 + $0x4] sm:$0xf]
                %311 = vst [vmem:[%s307 + $0x4] sm:$0xf] %v310
                %v312 = vld [vmem:[%s306 + $0x8] sm:$0xf]
                %313 = vst [vmem:[%s307 + $0x8] sm:$0xf] %v312
                %v314 = vld [vmem:[%s306 + $0xc] sm:$0xf]
                %315 = vst [vmem:[%s307 + $0xc] sm:$0xf] %v314
                %v316 = vld [vmem:[%s306 + $0x10] sm:$0xf]
                %317 = vst [vmem:[%s307 + $0x10] sm:$0xf] %v316
                %v318 = vld [vmem:[%s306 + $0x14] sm:$0xf]
                %319 = vst [vmem:[%s307 + $0x14] sm:$0xf] %v318
                %v320 = vld [vmem:[%s306 + $0x18] sm:$0xf]
                %321 = vst [vmem:[%s307 + $0x18] sm:$0xf] %v320
                %v322 = vld [vmem:[%s306 + $0x1c] sm:$0xf]
                %323 = vst [vmem:[%s307 + $0x1c] sm:$0xf] %v322
                %v324 = vld [vmem:[%s306 + $0x40] sm:$0xf]
                %325 = vst [vmem:[%s307 + $0x20] sm:$0xf] %v324
                %v326 = vld [vmem:[%s306 + $0x44] sm:$0xf]
                %327 = vst [vmem:[%s307 + $0x24] sm:$0xf] %v326
                %v328 = vld [vmem:[%s306 + $0x48] sm:$0xf]
                %329 = vst [vmem:[%s307 + $0x28] sm:$0xf] %v328
                %v330 = vld [vmem:[%s306 + $0x4c] sm:$0xf]
                %331 = vst [vmem:[%s307 + $0x2c] sm:$0xf] %v330
                %v332 = vld [vmem:[%s306 + $0x50] sm:$0xf]
                %333 = vst [vmem:[%s307 + $0x30] sm:$0xf] %v332
                %v334 = vld [vmem:[%s306 + $0x54] sm:$0xf]
                %335 = vst [vmem:[%s307 + $0x34] sm:$0xf] %v334
                %v336 = vld [vmem:[%s306 + $0x58] sm:$0xf]
                %337 = vst [vmem:[%s307 + $0x38] sm:$0xf] %v336
                %v338 = vld [vmem:[%s306 + $0x5c] sm:$0xf]
                %339 = vst [vmem:[%s307 + $0x3c] sm:$0xf] %v338
              $region61: #{pointnet_encoder_xyzrgb.1} parent=55 // loop_footer
                %s305 = sadd.s32 1, %s301
              $region62: #{pointnet_encoder_xyzrgb.1} parent=55 // loop_footer_branch
                %300 = sbr.rel target = $region58
              $region63: #{pointnet_encoder_xyzrgb.1} parent=55 // loop_exit
                _
            $region56: #{pointnet_encoder_xyzrgb.1} parent=47 // pred_fallthru
              _
          $region48: #{pointnet_encoder_xyzrgb.1} parent=43 // pred_fallthru
            _
          %391 = vnop
        $region44: #{pointnet_encoder_xyzrgb.1} parent=39 // pred_fallthru
          _
      $region40: #{pointnet_encoder_xyzrgb.1} parent=5 // pred_fallthru
        _
      %p392 = scmp.le.s32.totalorder 1, %s15
      %p393 = scmp.lt.s32.totalorder %s15, 3
      %p394 = pnand %p392, %p393
      %p395 = pneg %p394
      // Predicated region
      $region82: #{pointnet_encoder_xyzrgb.1} parent=5 // pred_check
        _
      $region83: #{pointnet_encoder_xyzrgb.1} parent=5 // pred_check_branch
        %397 = sbr.rel (%p394) target = $region85
      $region84: #{pointnet_encoder_xyzrgb.1} parent=5 // pred_region
        %s398 = ssub.s32 %s15, 1
        %s399 = sand.u32 %s51, 1
        %s400 = sand.u32 %s51, 1
        %s401 = smul.addr %s400, 64
        %s402 = scalar_lea.vmem [#allocation2], %s401
        // Predicated region
        $region86: #{pointnet_encoder_xyzrgb.1} parent=84 // pred_check
          %p403 = pneg %p64
        $region87: #{pointnet_encoder_xyzrgb.1} parent=84 // pred_check_branch
          %405 = sbr.rel (%p403) target = $region89
        $region88: #{pointnet_encoder_xyzrgb.1} parent=84 // pred_region
          _
        $region89: #{pointnet_encoder_xyzrgb.1} parent=84 // pred_fallthru
          _
        // Predicated region
        $region90: #{pointnet_encoder_xyzrgb.1} parent=84 // pred_check
          %p406 = pneg %p106
        $region91: #{pointnet_encoder_xyzrgb.1} parent=84 // pred_check_branch
          %408 = sbr.rel (%p406) target = $region93
        $region92: #{pointnet_encoder_xyzrgb.1} parent=84 // pred_region
          %409 = dma.done [#allocation4], 16
        $region93: #{pointnet_encoder_xyzrgb.1} parent=84 // pred_fallthru
          _
        // Predicated region
        $region94: #{pointnet_encoder_xyzrgb.1} parent=84 // pred_check
          %p410 = pneg %p148
        $region95: #{pointnet_encoder_xyzrgb.1} parent=84 // pred_check_branch
          %412 = sbr.rel (%p410) target = $region97
        $region96: #{pointnet_encoder_xyzrgb.1} parent=84 // pred_region
          %413 = dma.done [#allocation6], 32
        $region97: #{pointnet_encoder_xyzrgb.1} parent=84 // pred_fallthru
          _
        // Predicated region
        $region98: #{pointnet_encoder_xyzrgb.1} parent=84 // pred_check
          %p414 = pneg %p190
        $region99: #{pointnet_encoder_xyzrgb.1} parent=84 // pred_check_branch
          %416 = sbr.rel (%p414) target = $region101
        $region100: #{pointnet_encoder_xyzrgb.1} parent=84 // pred_region
          %417 = dma.done [#allocation6], 64
        $region101: #{pointnet_encoder_xyzrgb.1} parent=84 // pred_fallthru
          _
        %s418 = sand.u32 %s51, 1
        %s419 = sand.u32 %s51, 1
        %s420 = smul.addr %s419, 64
        %s421 = scalar_lea.vmem [#allocation2], %s420
        %p422 = pneg %p64
        %p423 = pneg %p61
        %p424 = pneg %p85
        %p425 = pneg %p82
        %p426 = pneg %p106
        %p427 = pneg %p103
        %p428 = pneg %p127
        %p429 = pneg %p124
        %p430 = pneg %p148
        %p431 = pneg %p145
        %p432 = pneg %p169
        %p433 = pneg %p166
        %p434 = pneg %p190
        %p435 = pneg %p187
        %p436 = pneg %p218
        %p437 = pneg %p215
        %p438 = scmp.lt.s32.totalorder %s25, 1
        %s439 = scalar_select %p438, %s25, 1
        %p440 = scmp.lt.s32.totalorder %s26, 0
        %s441 = scalar_select %p440, %s26, 0
        %s442 = smul.addr %s441, 4
        %s443 = smul.addr %s439, 4
        %s444 = sadd.s32 %s442, %s443
        %s445 = smul.addr %s444, 2
        %s446 = scalar_lea.vmem %s7, %s445
        %s447 = sadd.s32 %s25, %s27
        %s448 = smul.u32 2, %s26
        %s449 = smul.u32 8, %s447
        %p450 = scmp.lt.s32.totalorder %s25, 1
        %s451 = scalar_select %p450, %s25, 1
        %p452 = scmp.lt.s32.totalorder %s26, 0
        %s453 = scalar_select %p452, %s26, 0
        %s454 = smul.addr %s453, 4
        %s455 = smul.addr %s451, 4
        %s456 = sadd.s32 %s454, %s455
        %s457 = smul.addr %s456, 2
        %s458 = scalar_lea.vmem %s7, %s457
        %v460 = vld [vmem:[%s402] sm:$0xf]
        %v461 = vld [vmem:[%s402 + $0x4] sm:$0xf]
        %v462 = vld [vmem:[%s402 + $0x8] sm:$0xf]
        %v463 = vld [vmem:[%s402 + $0xc] sm:$0xf]
        %v464 = vld [vmem:[%s402 + $0x10] sm:$0xf]
        %v465 = vld [vmem:[%s402 + $0x14] sm:$0xf]
        %v466 = vld [vmem:[%s402 + $0x18] sm:$0xf]
        %v467 = vld [vmem:[%s402 + $0x1c] sm:$0xf]
        %v468 = vld [vmem:[%s402 + $0x20] sm:$0xf]
        %v469 = vld [vmem:[%s402 + $0x24] sm:$0xf]
        %v470 = vld [vmem:[%s402 + $0x28] sm:$0xf]
        %v471 = vld [vmem:[%s402 + $0x2c] sm:$0xf]
        %v472 = vld [vmem:[%s402 + $0x30] sm:$0xf]
        %v473 = vld [vmem:[%s402 + $0x34] sm:$0xf]
        %v474 = vld [vmem:[%s402 + $0x38] sm:$0xf]
        %v475 = vld [vmem:[%s402 + $0x3c] sm:$0xf]
        %v476 = vld [vmem:[%s1] sm:$0xf]
        %v477 = vld [vmem:[%s1 + $0x4] sm:$0xf]
        %v478 = vld [vmem:[%s1 + $0x8] sm:$0xf]
        %v479 = vld [vmem:[%s1 + $0xc] sm:$0xf]
        %v480 = vld [vmem:[%s1 + $0x10] sm:$0xf]
        %v481 = vld [vmem:[%s1 + $0x14] sm:$0xf]
        %v482 = vld [vmem:[%s1 + $0x18] sm:$0xf]
        %v483 = vld [vmem:[%s1 + $0x1c] sm:$0xf]
        %v484 = vld [vmem:[#allocation3] sm:$0x1]
        %v486 = vlaneseq
        %v487 = vshrl.u32 %v486, 7
        %v488 = vsub.s32 0, %v487
        %v489 = vrot.slane %v484, %v488
        %v507 = vunpack.c.l.b16 %v460
        %v508 = vunpack.c.l.b16 %v461
        %v509 = vunpack.c.l.b16 %v462
        %v510 = vunpack.c.l.b16 %v463
        %v511 = vunpack.c.l.b16 %v464
        %v512 = vunpack.c.l.b16 %v465
        %v513 = vunpack.c.l.b16 %v466
        %v514 = vunpack.c.l.b16 %v467
        %v515 = vunpack.c.l.b16 %v468
        %v516 = vunpack.c.l.b16 %v469
        %v517 = vunpack.c.l.b16 %v470
        %v518 = vunpack.c.l.b16 %v471
        %v519 = vunpack.c.l.b16 %v472
        %v520 = vunpack.c.l.b16 %v473
        %v521 = vunpack.c.l.b16 %v474
        %v522 = vunpack.c.l.b16 %v475
        %v523 = vpack.c.b16 %v508, %v507
        %v524 = vpack.c.b16 %v510, %v509
        %v525 = vpack.c.b16 %v512, %v511
        %v526 = vpack.c.b16 %v514, %v513
        %v527 = vpack.c.b16 %v516, %v515
        %v528 = vpack.c.b16 %v518, %v517
        %v529 = vpack.c.b16 %v520, %v519
        %v530 = vpack.c.b16 %v522, %v521
        %v539 = vunpack.c.l.b16 %v476
        %v540 = vunpack.c.l.b16 %v477
        %v541 = vunpack.c.l.b16 %v478
        %v542 = vunpack.c.l.b16 %v479
        %v543 = vunpack.c.l.b16 %v480
        %v544 = vunpack.c.l.b16 %v481
        %v545 = vunpack.c.l.b16 %v482
        %v546 = vunpack.c.l.b16 %v483
        %v547 = vpack.c.b16 %v540, %v539
        %v548 = vpack.c.b16 %v542, %v541
        %v549 = vpack.c.b16 %v544, %v543
        %v550 = vpack.c.b16 %v546, %v545
        %vm555 = vcmask 523264
        %v557 = vsel %vm555, %v523, 0
        %v560 = vsel %vm555, %v524, 0
        %v563 = vsel %vm555, %v525, 0
        %v566 = vsel %vm555, %v526, 0
        %v569 = vsel %vm555, %v527, 0
        %v572 = vsel %vm555, %v528, 0
        %v575 = vsel %vm555, %v529, 0
        %v578 = vsel %vm555, %v530, 0
        %580 = vmatprep.subr.bf16.mxu0 0
        %581 = vmatpush1.bf16.msra.mxu0 %v547
        %582 = vmatprep.subr.bf16.mxu0 0
        %583 = vmatpush1.bf16.msra.mxu0 %v548
        %584 = vmatprep.subr.bf16.mxu0 0
        %585 = vmatpush1.bf16.msra.mxu0 %v549
        %586 = vmatprep.subr.bf16.mxu0 0
        %587 = vmatpush1.bf16.msra.mxu0 %v550
        %588 = vmatprep.subr.bf16.mxu0 0
        %589 = vmatpush1.bf16.msra.mxu0 0
        %590 = vmatprep.subr.bf16.mxu0 0
        %591 = vmatpush1.bf16.msra.mxu0 0
        %592 = vmatprep.subr.bf16.mxu0 0
        %593 = vmatpush1.bf16.msra.mxu0 0
        %594 = vmatprep.subr.bf16.mxu0 0
        %595 = vmatpush1.bf16.msra.mxu0 0
        %596 = vmatprep.subr.bf16.mxu0 0
        %597 = vmatpush1.bf16.msra.mxu0 0
        %598 = vmatprep.subr.bf16.mxu0 0
        %599 = vmatpush1.bf16.msra.mxu0 0
        %600 = vmatprep.subr.bf16.mxu0 0
        %601 = vmatpush1.bf16.msra.mxu0 0
        %602 = vmatprep.subr.bf16.mxu0 0
        %603 = vmatpush1.bf16.msra.mxu0 0
        %604 = vmatprep.subr.bf16.mxu0 0
        %605 = vmatpush1.bf16.msra.mxu0 0
        %606 = vmatprep.subr.bf16.mxu0 0
        %607 = vmatpush1.bf16.msra.mxu0 0
        %608 = vmatprep.subr.bf16.mxu0 0
        %609 = vmatpush1.bf16.msra.mxu0 0
        %610 = vmatprep.subr.bf16.mxu0 0
        %611 = vmatpush1.bf16.msra.mxu0 0
        %612 = vmatprep.mubr.bf16.mxu0 0
        %613 = vmatmul.mubr.bf16.gmra.mrb[0].mxu0 %v557
        %v614 = vpop.f32.mrb[0].mxu0
        %v615 = vadd.f32 %v489, %v614
        %v616 = vpop.f32.mrb[0].mxu0
        %v617 = vpop.f32.mrb[0].mxu0
        %v618 = vadd.f32 %v489, %v617
        %v619 = vpop.f32.mrb[0].mxu0
        %620 = vmatprep.mubr.bf16.mxu0 0
        %621 = vmatmul.mubr.bf16.gmra.mrb[0].mxu0 %v560
        %v622 = vpop.f32.mrb[0].mxu0
        %v623 = vadd.f32 %v489, %v622
        %v624 = vpop.f32.mrb[0].mxu0
        %v625 = vpop.f32.mrb[0].mxu0
        %v626 = vadd.f32 %v489, %v625
        %v627 = vpop.f32.mrb[0].mxu0
        %628 = vmatprep.mubr.bf16.mxu0 0
        %629 = vmatmul.mubr.bf16.gmra.mrb[0].mxu0 %v563
        %v630 = vpop.f32.mrb[0].mxu0
        %v631 = vadd.f32 %v489, %v630
        %v632 = vpop.f32.mrb[0].mxu0
        %v633 = vpop.f32.mrb[0].mxu0
        %v634 = vadd.f32 %v489, %v633
        %v635 = vpop.f32.mrb[0].mxu0
        %636 = vmatprep.mubr.bf16.mxu0 0
        %637 = vmatmul.mubr.bf16.gmra.mrb[0].mxu0 %v566
        %v638 = vpop.f32.mrb[0].mxu0
        %v639 = vadd.f32 %v489, %v638
        %v640 = vpop.f32.mrb[0].mxu0
        %v641 = vpop.f32.mrb[0].mxu0
        %v642 = vadd.f32 %v489, %v641
        %v643 = vpop.f32.mrb[0].mxu0
        %644 = vmatprep.mubr.bf16.mxu0 0
        %645 = vmatmul.mubr.bf16.gmra.mrb[0].mxu0 %v569
        %v646 = vpop.f32.mrb[0].mxu0
        %v647 = vadd.f32 %v489, %v646
        %v648 = vpop.f32.mrb[0].mxu0
        %v649 = vpop.f32.mrb[0].mxu0
        %v650 = vadd.f32 %v489, %v649
        %v651 = vpop.f32.mrb[0].mxu0
        %652 = vmatprep.mubr.bf16.mxu0 0
        %653 = vmatmul.mubr.bf16.gmra.mrb[0].mxu0 %v572
        %v654 = vpop.f32.mrb[0].mxu0
        %v655 = vadd.f32 %v489, %v654
        %v656 = vpop.f32.mrb[0].mxu0
        %v657 = vpop.f32.mrb[0].mxu0
        %v658 = vadd.f32 %v489, %v657
        %v659 = vpop.f32.mrb[0].mxu0
        %660 = vmatprep.mubr.bf16.mxu0 0
        %661 = vmatmul.mubr.bf16.gmra.mrb[0].mxu0 %v575
        %v662 = vpop.f32.mrb[0].mxu0
        %v663 = vadd.f32 %v489, %v662
        %v664 = vpop.f32.mrb[0].mxu0
        %v665 = vpop.f32.mrb[0].mxu0
        %v666 = vadd.f32 %v489, %v665
        %v667 = vpop.f32.mrb[0].mxu0
        %668 = vmatprep.mubr.bf16.mxu0 0
        %669 = vmatmul.mubr.bf16.gmra.mrb[0].mxu0 %v578
        %v670 = vpop.f32.mrb[0].mxu0
        %v671 = vadd.f32 %v489, %v670
        %v672 = vpop.f32.mrb[0].mxu0
        %v673 = vpop.f32.mrb[0].mxu0
        %v674 = vadd.f32 %v489, %v673
        %v675 = vpop.f32.mrb[0].mxu0
        %676 = vdwg.mxu0
        %v677 = vmax.f32 %v615, 0.0
        %v678 = vmax.f32 %v618, 0.0
        %v679 = vmax.f32 %v623, 0.0
        %v680 = vmax.f32 %v626, 0.0
        %v681 = vmax.f32 %v631, 0.0
        %v682 = vmax.f32 %v634, 0.0
        %v683 = vmax.f32 %v639, 0.0
        %v684 = vmax.f32 %v642, 0.0
        %v685 = vmax.f32 %v647, 0.0
        %v686 = vmax.f32 %v650, 0.0
        %v687 = vmax.f32 %v655, 0.0
        %v688 = vmax.f32 %v658, 0.0
        %v689 = vmax.f32 %v663, 0.0
        %v690 = vmax.f32 %v666, 0.0
        %v691 = vmax.f32 %v671, 0.0
        %v692 = vmax.f32 %v674, 0.0
        %v693 = vpack.c.bf16 %v678, %v677
        %v694 = vpack.c.bf16 %v680, %v679
        %v695 = vpack.c.bf16 %v682, %v681
        %v696 = vpack.c.bf16 %v684, %v683
        %v697 = vpack.c.bf16 %v686, %v685
        %v698 = vpack.c.bf16 %v688, %v687
        %v699 = vpack.c.bf16 %v690, %v689
        %v700 = vpack.c.bf16 %v692, %v691
        %v701 = vld [vmem:[%s3] sm:$0xff]
        %v702 = vld [vmem:[%s3 + $0x8] sm:$0xff]
        %v703 = vld [vmem:[%s3 + $0x10] sm:$0xff]
        %v704 = vld [vmem:[%s3 + $0x18] sm:$0xff]
        %v705 = vld [vmem:[%s3 + $0x20] sm:$0xff]
        %v706 = vld [vmem:[%s3 + $0x28] sm:$0xff]
        %v707 = vld [vmem:[%s3 + $0x30] sm:$0xff]
        %v708 = vld [vmem:[%s3 + $0x38] sm:$0xff]
        %v709 = vld [vmem:[%s3 + $0x40] sm:$0xff]
        %v710 = vld [vmem:[%s3 + $0x48] sm:$0xff]
        %v711 = vld [vmem:[%s3 + $0x50] sm:$0xff]
        %v712 = vld [vmem:[%s3 + $0x58] sm:$0xff]
        %v713 = vld [vmem:[%s3 + $0x60] sm:$0xff]
        %v714 = vld [vmem:[%s3 + $0x68] sm:$0xff]
        %v715 = vld [vmem:[%s3 + $0x70] sm:$0xff]
        %v716 = vld [vmem:[%s3 + $0x78] sm:$0xff]
        %v717 = vld [vmem:[#allocation5] sm:$0x3]
        %v719 = vlaneseq
        %v720 = vshrl.u32 %v719, 7
        %v721 = vsub.s32 0, %v720
        %v722 = vrot.slane %v717, %v721
        %v723 = vlaneseq
        %v724 = vshrl.u32 %v723, 7
        %v725 = vsub.s32 1, %v724
        %v726 = vrot.slane %v717, %v725
        %v745 = vunpack.c.l.b16 %v701
        %v746 = vunpack.c.h.b16 %v701
        %v747 = vunpack.c.l.b16 %v702
        %v748 = vunpack.c.h.b16 %v702
        %v749 = vunpack.c.l.b16 %v703
        %v750 = vunpack.c.h.b16 %v703
        %v751 = vunpack.c.l.b16 %v704
        %v752 = vunpack.c.h.b16 %v704
        %v753 = vunpack.c.l.b16 %v705
        %v754 = vunpack.c.h.b16 %v705
        %v755 = vunpack.c.l.b16 %v706
        %v756 = vunpack.c.h.b16 %v706
        %v757 = vunpack.c.l.b16 %v707
        %v758 = vunpack.c.h.b16 %v707
        %v759 = vunpack.c.l.b16 %v708
        %v760 = vunpack.c.h.b16 %v708
        %v761 = vunpack.c.l.b16 %v709
        %v762 = vunpack.c.h.b16 %v709
        %v763 = vunpack.c.l.b16 %v710
        %v764 = vunpack.c.h.b16 %v710
        %v765 = vunpack.c.l.b16 %v711
        %v766 = vunpack.c.h.b16 %v711
        %v767 = vunpack.c.l.b16 %v712
        %v768 = vunpack.c.h.b16 %v712
        %v769 = vunpack.c.l.b16 %v713
        %v770 = vunpack.c.h.b16 %v713
        %v771 = vunpack.c.l.b16 %v714
        %v772 = vunpack.c.h.b16 %v714
        %v773 = vunpack.c.l.b16 %v715
        %v774 = vunpack.c.h.b16 %v715
        %v775 = vunpack.c.l.b16 %v716
        %v776 = vunpack.c.h.b16 %v716
        %v777 = vpack.c.b16 %v747, %v745
        %v778 = vpack.c.b16 %v748, %v746
        %v779 = vpack.c.b16 %v751, %v749
        %v780 = vpack.c.b16 %v752, %v750
        %v781 = vpack.c.b16 %v755, %v753
        %v782 = vpack.c.b16 %v756, %v754
        %v783 = vpack.c.b16 %v759, %v757
        %v784 = vpack.c.b16 %v760, %v758
        %v785 = vpack.c.b16 %v763, %v761
        %v786 = vpack.c.b16 %v764, %v762
        %v787 = vpack.c.b16 %v767, %v765
        %v788 = vpack.c.b16 %v768, %v766
        %v789 = vpack.c.b16 %v771, %v769
        %v790 = vpack.c.b16 %v772, %v770
        %v791 = vpack.c.b16 %v775, %v773
        %v792 = vpack.c.b16 %v776, %v774
        %809 = vmatprep.subr.bf16.mxu0 %v778
        %810 = vmatpush1.bf16.msra.mxu0 %v777
        %811 = vmatprep.subr.bf16.mxu0 %v780
        %812 = vmatpush1.bf16.msra.mxu0 %v779
        %813 = vmatprep.subr.bf16.mxu0 %v782
        %814 = vmatpush1.bf16.msra.mxu0 %v781
        %815 = vmatprep.subr.bf16.mxu0 %v784
        %816 = vmatpush1.bf16.msra.mxu0 %v783
        %817 = vmatprep.subr.bf16.mxu0 %v786
        %818 = vmatpush1.bf16.msra.mxu0 %v785
        %819 = vmatprep.subr.bf16.mxu0 %v788
        %820 = vmatpush1.bf16.msra.mxu0 %v787
        %821 = vmatprep.subr.bf16.mxu0 %v790
        %822 = vmatpush1.bf16.msra.mxu0 %v789
        %823 = vmatprep.subr.bf16.mxu0 %v792
        %824 = vmatpush1.bf16.msra.mxu0 %v791
        %825 = vmatprep.subr.bf16.mxu0 0
        %826 = vmatpush1.bf16.msra.mxu0 0
        %827 = vmatprep.subr.bf16.mxu0 0
        %828 = vmatpush1.bf16.msra.mxu0 0
        %829 = vmatprep.subr.bf16.mxu0 0
        %830 = vmatpush1.bf16.msra.mxu0 0
        %831 = vmatprep.subr.bf16.mxu0 0
        %832 = vmatpush1.bf16.msra.mxu0 0
        %833 = vmatprep.subr.bf16.mxu0 0
        %834 = vmatpush1.bf16.msra.mxu0 0
        %835 = vmatprep.subr.bf16.mxu0 0
        %836 = vmatpush1.bf16.msra.mxu0 0
        %837 = vmatprep.subr.bf16.mxu0 0
        %838 = vmatpush1.bf16.msra.mxu0 0
        %839 = vmatprep.subr.bf16.mxu0 0
        %840 = vmatpush1.bf16.msra.mxu0 0
        %841 = vmatprep.mubr.bf16.mxu0 0
        %842 = vmatmul.mubr.bf16.gmra.mrb[0].mxu0 %v693
        %v843 = vpop.f32.mrb[0].mxu0
        %v844 = vadd.f32 %v722, %v843
        %v845 = vpop.f32.mrb[0].mxu0
        %v846 = vadd.f32 %v726, %v845
        %v847 = vpop.f32.mrb[0].mxu0
        %v848 = vadd.f32 %v722, %v847
        %v849 = vpop.f32.mrb[0].mxu0
        %v850 = vadd.f32 %v726, %v849
        %851 = vmatprep.mubr.bf16.mxu0 0
        %852 = vmatmul.mubr.bf16.gmra.mrb[0].mxu0 %v694
        %v853 = vpop.f32.mrb[0].mxu0
        %v854 = vadd.f32 %v722, %v853
        %v855 = vpop.f32.mrb[0].mxu0
        %v856 = vadd.f32 %v726, %v855
        %v857 = vpop.f32.mrb[0].mxu0
        %v858 = vadd.f32 %v722, %v857
        %v859 = vpop.f32.mrb[0].mxu0
        %v860 = vadd.f32 %v726, %v859
        %861 = vmatprep.mubr.bf16.mxu0 0
        %862 = vmatmul.mubr.bf16.gmra.mrb[0].mxu0 %v695
        %v863 = vpop.f32.mrb[0].mxu0
        %v864 = vadd.f32 %v722, %v863
        %v865 = vpop.f32.mrb[0].mxu0
        %v866 = vadd.f32 %v726, %v865
        %v867 = vpop.f32.mrb[0].mxu0
        %v868 = vadd.f32 %v722, %v867
        %v869 = vpop.f32.mrb[0].mxu0
        %v870 = vadd.f32 %v726, %v869
        %871 = vmatprep.mubr.bf16.mxu0 0
        %872 = vmatmul.mubr.bf16.gmra.mrb[0].mxu0 %v696
        %v873 = vpop.f32.mrb[0].mxu0
        %v874 = vadd.f32 %v722, %v873
        %v875 = vpop.f32.mrb[0].mxu0
        %v876 = vadd.f32 %v726, %v875
        %v877 = vpop.f32.mrb[0].mxu0
        %v878 = vadd.f32 %v722, %v877
        %v879 = vpop.f32.mrb[0].mxu0
        %v880 = vadd.f32 %v726, %v879
        %881 = vmatprep.mubr.bf16.mxu0 0
        %882 = vmatmul.mubr.bf16.gmra.mrb[0].mxu0 %v697
        %v883 = vpop.f32.mrb[0].mxu0
        %v884 = vadd.f32 %v722, %v883
        %v885 = vpop.f32.mrb[0].mxu0
        %v886 = vadd.f32 %v726, %v885
        %v887 = vpop.f32.mrb[0].mxu0
        %v888 = vadd.f32 %v722, %v887
        %v889 = vpop.f32.mrb[0].mxu0
        %v890 = vadd.f32 %v726, %v889
        %891 = vmatprep.mubr.bf16.mxu0 0
        %892 = vmatmul.mubr.bf16.gmra.mrb[0].mxu0 %v698
        %v893 = vpop.f32.mrb[0].mxu0
        %v894 = vadd.f32 %v722, %v893
        %v895 = vpop.f32.mrb[0].mxu0
        %v896 = vadd.f32 %v726, %v895
        %v897 = vpop.f32.mrb[0].mxu0
        %v898 = vadd.f32 %v722, %v897
        %v899 = vpop.f32.mrb[0].mxu0
        %v900 = vadd.f32 %v726, %v899
        %901 = vmatprep.mubr.bf16.mxu0 0
        %902 = vmatmul.mubr.bf16.gmra.mrb[0].mxu0 %v699
        %v903 = vpop.f32.mrb[0].mxu0
        %v904 = vadd.f32 %v722, %v903
        %v905 = vpop.f32.mrb[0].mxu0
        %v906 = vadd.f32 %v726, %v905
        %v907 = vpop.f32.mrb[0].mxu0
        %v908 = vadd.f32 %v722, %v907
        %v909 = vpop.f32.mrb[0].mxu0
        %v910 = vadd.f32 %v726, %v909
        %911 = vmatprep.mubr.bf16.mxu0 0
        %912 = vmatmul.mubr.bf16.gmra.mrb[0].mxu0 %v700
        %v913 = vpop.f32.mrb[0].mxu0
        %v914 = vadd.f32 %v722, %v913
        %v915 = vpop.f32.mrb[0].mxu0
        %v916 = vadd.f32 %v726, %v915
        %v917 = vpop.f32.mrb[0].mxu0
        %v918 = vadd.f32 %v722, %v917
        %v919 = vpop.f32.mrb[0].mxu0
        %v920 = vadd.f32 %v726, %v919
        %921 = vdwg.mxu0
        %v922 = vmax.f32 %v844, 0.0
        %v923 = vmax.f32 %v846, 0.0
        %v924 = vmax.f32 %v848, 0.0
        %v925 = vmax.f32 %v850, 0.0
        %v926 = vmax.f32 %v854, 0.0
        %v927 = vmax.f32 %v856, 0.0
        %v928 = vmax.f32 %v858, 0.0
        %v929 = vmax.f32 %v860, 0.0
        %v930 = vmax.f32 %v864, 0.0
        %v931 = vmax.f32 %v866, 0.0
        %v932 = vmax.f32 %v868, 0.0
        %v933 = vmax.f32 %v870, 0.0
        %v934 = vmax.f32 %v874, 0.0
        %v935 = vmax.f32 %v876, 0.0
        %v936 = vmax.f32 %v878, 0.0
        %v937 = vmax.f32 %v880, 0.0
        %v938 = vmax.f32 %v884, 0.0
        %v939 = vmax.f32 %v886, 0.0
        %v940 = vmax.f32 %v888, 0.0
        %v941 = vmax.f32 %v890, 0.0
        %v942 = vmax.f32 %v894, 0.0
        %v943 = vmax.f32 %v896, 0.0
        %v944 = vmax.f32 %v898, 0.0
        %v945 = vmax.f32 %v900, 0.0
        %v946 = vmax.f32 %v904, 0.0
        %v947 = vmax.f32 %v906, 0.0
        %v948 = vmax.f32 %v908, 0.0
        %v949 = vmax.f32 %v910, 0.0
        %v950 = vmax.f32 %v914, 0.0
        %v951 = vmax.f32 %v916, 0.0
        %v952 = vmax.f32 %v918, 0.0
        %v953 = vmax.f32 %v920, 0.0
        %v954 = vpack.c.bf16 %v924, %v922
        %v955 = vpack.c.bf16 %v925, %v923
        %v956 = vpack.c.bf16 %v928, %v926
        %v957 = vpack.c.bf16 %v929, %v927
        %v958 = vpack.c.bf16 %v932, %v930
        %v959 = vpack.c.bf16 %v933, %v931
        %v960 = vpack.c.bf16 %v936, %v934
        %v961 = vpack.c.bf16 %v937, %v935
        %v962 = vpack.c.bf16 %v940, %v938
        %v963 = vpack.c.bf16 %v941, %v939
        %v964 = vpack.c.bf16 %v944, %v942
        %v965 = vpack.c.bf16 %v945, %v943
        %v966 = vpack.c.bf16 %v948, %v946
        %v967 = vpack.c.bf16 %v949, %v947
        %v968 = vpack.c.bf16 %v952, %v950
        %v969 = vpack.c.bf16 %v953, %v951
        %v970 = vld [vmem:[%s5] sm:$0xff]
        %v971 = vld [vmem:[%s5 + $0x8] sm:$0xff]
        %v972 = vld [vmem:[%s5 + $0x10] sm:$0xff]
        %v973 = vld [vmem:[%s5 + $0x18] sm:$0xff]
        %v974 = vld [vmem:[%s5 + $0x20] sm:$0xff]
        %v975 = vld [vmem:[%s5 + $0x28] sm:$0xff]
        %v976 = vld [vmem:[%s5 + $0x30] sm:$0xff]
        %v977 = vld [vmem:[%s5 + $0x38] sm:$0xff]
        %v978 = vld [vmem:[%s5 + $0x40] sm:$0xff]
        %v979 = vld [vmem:[%s5 + $0x48] sm:$0xff]
        %v980 = vld [vmem:[%s5 + $0x50] sm:$0xff]
        %v981 = vld [vmem:[%s5 + $0x58] sm:$0xff]
        %v982 = vld [vmem:[%s5 + $0x60] sm:$0xff]
        %v983 = vld [vmem:[%s5 + $0x68] sm:$0xff]
        %v984 = vld [vmem:[%s5 + $0x70] sm:$0xff]
        %v985 = vld [vmem:[%s5 + $0x78] sm:$0xff]
        %v986 = vld [vmem:[%s5 + $0x80] sm:$0xff]
        %v987 = vld [vmem:[%s5 + $0x88] sm:$0xff]
        %v988 = vld [vmem:[%s5 + $0x90] sm:$0xff]
        %v989 = vld [vmem:[%s5 + $0x98] sm:$0xff]
        %v990 = vld [vmem:[%s5 + $0xa0] sm:$0xff]
        %v991 = vld [vmem:[%s5 + $0xa8] sm:$0xff]
        %v992 = vld [vmem:[%s5 + $0xb0] sm:$0xff]
        %v993 = vld [vmem:[%s5 + $0xb8] sm:$0xff]
        %v994 = vld [vmem:[%s5 + $0xc0] sm:$0xff]
        %v995 = vld [vmem:[%s5 + $0xc8] sm:$0xff]
        %v996 = vld [vmem:[%s5 + $0xd0] sm:$0xff]
        %v997 = vld [vmem:[%s5 + $0xd8] sm:$0xff]
        %v998 = vld [vmem:[%s5 + $0xe0] sm:$0xff]
        %v999 = vld [vmem:[%s5 + $0xe8] sm:$0xff]
        %v1000 = vld [vmem:[%s5 + $0xf0] sm:$0xff]
        %v1001 = vld [vmem:[%s5 + $0xf8] sm:$0xff]
        %v1002 = vld [vmem:[%s5 + $0x100] sm:$0xff]
        %v1003 = vld [vmem:[%s5 + $0x108] sm:$0xff]
        %v1004 = vld [vmem:[%s5 + $0x110] sm:$0xff]
        %v1005 = vld [vmem:[%s5 + $0x118] sm:$0xff]
        %v1006 = vld [vmem:[%s5 + $0x120] sm:$0xff]
        %v1007 = vld [vmem:[%s5 + $0x128] sm:$0xff]
        %v1008 = vld [vmem:[%s5 + $0x130] sm:$0xff]
        %v1009 = vld [vmem:[%s5 + $0x138] sm:$0xff]
        %v1010 = vld [vmem:[%s5 + $0x140] sm:$0xff]
        %v1011 = vld [vmem:[%s5 + $0x148] sm:$0xff]
        %v1012 = vld [vmem:[%s5 + $0x150] sm:$0xff]
        %v1013 = vld [vmem:[%s5 + $0x158] sm:$0xff]
        %v1014 = vld [vmem:[%s5 + $0x160] sm:$0xff]
        %v1015 = vld [vmem:[%s5 + $0x168] sm:$0xff]
        %v1016 = vld [vmem:[%s5 + $0x170] sm:$0xff]
        %v1017 = vld [vmem:[%s5 + $0x178] sm:$0xff]
        %v1018 = vld [vmem:[%s5 + $0x180] sm:$0xff]
        %v1019 = vld [vmem:[%s5 + $0x188] sm:$0xff]
        %v1020 = vld [vmem:[%s5 + $0x190] sm:$0xff]
        %v1021 = vld [vmem:[%s5 + $0x198] sm:$0xff]
        %v1022 = vld [vmem:[%s5 + $0x1a0] sm:$0xff]
        %v1023 = vld [vmem:[%s5 + $0x1a8] sm:$0xff]
        %v1024 = vld [vmem:[%s5 + $0x1b0] sm:$0xff]
        %v1025 = vld [vmem:[%s5 + $0x1b8] sm:$0xff]
        %v1026 = vld [vmem:[%s5 + $0x1c0] sm:$0xff]
        %v1027 = vld [vmem:[%s5 + $0x1c8] sm:$0xff]
        %v1028 = vld [vmem:[%s5 + $0x1d0] sm:$0xff]
        %v1029 = vld [vmem:[%s5 + $0x1d8] sm:$0xff]
        %v1030 = vld [vmem:[%s5 + $0x1e0] sm:$0xff]
        %v1031 = vld [vmem:[%s5 + $0x1e8] sm:$0xff]
        %v1032 = vld [vmem:[%s5 + $0x1f0] sm:$0xff]
        %v1033 = vld [vmem:[%s5 + $0x1f8] sm:$0xff]
        %v1034 = vld [vmem:[#allocation7] sm:$0xf]
        %v1036 = vlaneseq
        %v1037 = vshrl.u32 %v1036, 7
        %v1038 = vsub.s32 0, %v1037
        %v1039 = vrot.slane %v1034, %v1038
        %v1040 = vlaneseq
        %v1041 = vshrl.u32 %v1040, 7
        %v1042 = vsub.s32 1, %v1041
        %v1043 = vrot.slane %v1034, %v1042
        %v1044 = vlaneseq
        %v1045 = vshrl.u32 %v1044, 7
        %v1046 = vsub.s32 2, %v1045
        %v1047 = vrot.slane %v1034, %v1046
        %v1048 = vlaneseq
        %v1049 = vshrl.u32 %v1048, 7
        %v1050 = vsub.s32 3, %v1049
        %v1051 = vrot.slane %v1034, %v1050
        %v1120 = vunpack.c.l.b16 %v970
        %v1121 = vunpack.c.h.b16 %v970
        %v1122 = vunpack.c.l.b16 %v971
        %v1123 = vunpack.c.h.b16 %v971
        %v1124 = vunpack.c.l.b16 %v972
        %v1125 = vunpack.c.h.b16 %v972
        %v1126 = vunpack.c.l.b16 %v973
        %v1127 = vunpack.c.h.b16 %v973
        %v1128 = vunpack.c.l.b16 %v974
        %v1129 = vunpack.c.h.b16 %v974
        %v1130 = vunpack.c.l.b16 %v975
        %v1131 = vunpack.c.h.b16 %v975
        %v1132 = vunpack.c.l.b16 %v976
        %v1133 = vunpack.c.h.b16 %v976
        %v1134 = vunpack.c.l.b16 %v977
        %v1135 = vunpack.c.h.b16 %v977
        %v1136 = vunpack.c.l.b16 %v978
        %v1137 = vunpack.c.h.b16 %v978
        %v1138 = vunpack.c.l.b16 %v979
        %v1139 = vunpack.c.h.b16 %v979
        %v1140 = vunpack.c.l.b16 %v980
        %v1141 = vunpack.c.h.b16 %v980
        %v1142 = vunpack.c.l.b16 %v981
        %v1143 = vunpack.c.h.b16 %v981
        %v1144 = vunpack.c.l.b16 %v982
        %v1145 = vunpack.c.h.b16 %v982
        %v1146 = vunpack.c.l.b16 %v983
        %v1147 = vunpack.c.h.b16 %v983
        %v1148 = vunpack.c.l.b16 %v984
        %v1149 = vunpack.c.h.b16 %v984
        %v1150 = vunpack.c.l.b16 %v985
        %v1151 = vunpack.c.h.b16 %v985
        %v1152 = vunpack.c.l.b16 %v986
        %v1153 = vunpack.c.h.b16 %v986
        %v1154 = vunpack.c.l.b16 %v987
        %v1155 = vunpack.c.h.b16 %v987
        %v1156 = vunpack.c.l.b16 %v988
        %v1157 = vunpack.c.h.b16 %v988
        %v1158 = vunpack.c.l.b16 %v989
        %v1159 = vunpack.c.h.b16 %v989
        %v1160 = vunpack.c.l.b16 %v990
        %v1161 = vunpack.c.h.b16 %v990
        %v1162 = vunpack.c.l.b16 %v991
        %v1163 = vunpack.c.h.b16 %v991
        %v1164 = vunpack.c.l.b16 %v992
        %v1165 = vunpack.c.h.b16 %v992
        %v1166 = vunpack.c.l.b16 %v993
        %v1167 = vunpack.c.h.b16 %v993
        %v1168 = vunpack.c.l.b16 %v994
        %v1169 = vunpack.c.h.b16 %v994
        %v1170 = vunpack.c.l.b16 %v995
        %v1171 = vunpack.c.h.b16 %v995
        %v1172 = vunpack.c.l.b16 %v996
        %v1173 = vunpack.c.h.b16 %v996
        %v1174 = vunpack.c.l.b16 %v997
        %v1175 = vunpack.c.h.b16 %v997
        %v1176 = vunpack.c.l.b16 %v998
        %v1177 = vunpack.c.h.b16 %v998
        %v1178 = vunpack.c.l.b16 %v999
        %v1179 = vunpack.c.h.b16 %v999
        %v1180 = vunpack.c.l.b16 %v1000
        %v1181 = vunpack.c.h.b16 %v1000
        %v1182 = vunpack.c.l.b16 %v1001
        %v1183 = vunpack.c.h.b16 %v1001
        %v1184 = vunpack.c.l.b16 %v1002
        %v1185 = vunpack.c.h.b16 %v1002
        %v1186 = vunpack.c.l.b16 %v1003
        %v1187 = vunpack.c.h.b16 %v1003
        %v1188 = vunpack.c.l.b16 %v1004
        %v1189 = vunpack.c.h.b16 %v1004
        %v1190 = vunpack.c.l.b16 %v1005
        %v1191 = vunpack.c.h.b16 %v1005
        %v1192 = vunpack.c.l.b16 %v1006
        %v1193 = vunpack.c.h.b16 %v1006
        %v1194 = vunpack.c.l.b16 %v1007
        %v1195 = vunpack.c.h.b16 %v1007
        %v1196 = vunpack.c.l.b16 %v1008
        %v1197 = vunpack.c.h.b16 %v1008
        %v1198 = vunpack.c.l.b16 %v1009
        %v1199 = vunpack.c.h.b16 %v1009
        %v1200 = vunpack.c.l.b16 %v1010
        %v1201 = vunpack.c.h.b16 %v1010
        %v1202 = vunpack.c.l.b16 %v1011
        %v1203 = vunpack.c.h.b16 %v1011
        %v1204 = vunpack.c.l.b16 %v1012
        %v1205 = vunpack.c.h.b16 %v1012
        %v1206 = vunpack.c.l.b16 %v1013
        %v1207 = vunpack.c.h.b16 %v1013
        %v1208 = vunpack.c.l.b16 %v1014
        %v1209 = vunpack.c.h.b16 %v1014
        %v1210 = vunpack.c.l.b16 %v1015
        %v1211 = vunpack.c.h.b16 %v1015
        %v1212 = vunpack.c.l.b16 %v1016
        %v1213 = vunpack.c.h.b16 %v1016
        %v1214 = vunpack.c.l.b16 %v1017
        %v1215 = vunpack.c.h.b16 %v1017
        %v1216 = vunpack.c.l.b16 %v1018
        %v1217 = vunpack.c.h.b16 %v1018
        %v1218 = vunpack.c.l.b16 %v1019
        %v1219 = vunpack.c.h.b16 %v1019
        %v1220 = vunpack.c.l.b16 %v1020
        %v1221 = vunpack.c.h.b16 %v1020
        %v1222 = vunpack.c.l.b16 %v1021
        %v1223 = vunpack.c.h.b16 %v1021
        %v1224 = vunpack.c.l.b16 %v1022
        %v1225 = vunpack.c.h.b16 %v1022
        %v1226 = vunpack.c.l.b16 %v1023
        %v1227 = vunpack.c.h.b16 %v1023
        %v1228 = vunpack.c.l.b16 %v1024
        %v1229 = vunpack.c.h.b16 %v1024
        %v1230 = vunpack.c.l.b16 %v1025
        %v1231 = vunpack.c.h.b16 %v1025
        %v1232 = vunpack.c.l.b16 %v1026
        %v1233 = vunpack.c.h.b16 %v1026
        %v1234 = vunpack.c.l.b16 %v1027
        %v1235 = vunpack.c.h.b16 %v1027
        %v1236 = vunpack.c.l.b16 %v1028
        %v1237 = vunpack.c.h.b16 %v1028
        %v1238 = vunpack.c.l.b16 %v1029
        %v1239 = vunpack.c.h.b16 %v1029
        %v1240 = vunpack.c.l.b16 %v1030
        %v1241 = vunpack.c.h.b16 %v1030
        %v1242 = vunpack.c.l.b16 %v1031
        %v1243 = vunpack.c.h.b16 %v1031
        %v1244 = vunpack.c.l.b16 %v1032
        %v1245 = vunpack.c.h.b16 %v1032
        %v1246 = vunpack.c.l.b16 %v1033
        %v1247 = vunpack.c.h.b16 %v1033
        %v1248 = vpack.c.b16 %v1124, %v1120
        %v1249 = vpack.c.b16 %v1125, %v1121
        %v1250 = vpack.c.b16 %v1126, %v1122
        %v1251 = vpack.c.b16 %v1127, %v1123
        %v1252 = vpack.c.b16 %v1132, %v1128
        %v1253 = vpack.c.b16 %v1133, %v1129
        %v1254 = vpack.c.b16 %v1134, %v1130
        %v1255 = vpack.c.b16 %v1135, %v1131
        %v1256 = vpack.c.b16 %v1140, %v1136
        %v1257 = vpack.c.b16 %v1141, %v1137
        %v1258 = vpack.c.b16 %v1142, %v1138
        %v1259 = vpack.c.b16 %v1143, %v1139
        %v1260 = vpack.c.b16 %v1148, %v1144
        %v1261 = vpack.c.b16 %v1149, %v1145
        %v1262 = vpack.c.b16 %v1150, %v1146
        %v1263 = vpack.c.b16 %v1151, %v1147
        %v1264 = vpack.c.b16 %v1156, %v1152
        %v1265 = vpack.c.b16 %v1157, %v1153
        %v1266 = vpack.c.b16 %v1158, %v1154
        %v1267 = vpack.c.b16 %v1159, %v1155
        %v1268 = vpack.c.b16 %v1164, %v1160
        %v1269 = vpack.c.b16 %v1165, %v1161
        %v1270 = vpack.c.b16 %v1166, %v1162
        %v1271 = vpack.c.b16 %v1167, %v1163
        %v1272 = vpack.c.b16 %v1172, %v1168
        %v1273 = vpack.c.b16 %v1173, %v1169
        %v1274 = vpack.c.b16 %v1174, %v1170
        %v1275 = vpack.c.b16 %v1175, %v1171
        %v1276 = vpack.c.b16 %v1180, %v1176
        %v1277 = vpack.c.b16 %v1181, %v1177
        %v1278 = vpack.c.b16 %v1182, %v1178
        %v1279 = vpack.c.b16 %v1183, %v1179
        %v1280 = vpack.c.b16 %v1188, %v1184
        %v1281 = vpack.c.b16 %v1189, %v1185
        %v1282 = vpack.c.b16 %v1190, %v1186
        %v1283 = vpack.c.b16 %v1191, %v1187
        %v1284 = vpack.c.b16 %v1196, %v1192
        %v1285 = vpack.c.b16 %v1197, %v1193
        %v1286 = vpack.c.b16 %v1198, %v1194
        %v1287 = vpack.c.b16 %v1199, %v1195
        %v1288 = vpack.c.b16 %v1204, %v1200
        %v1289 = vpack.c.b16 %v1205, %v1201
        %v1290 = vpack.c.b16 %v1206, %v1202
        %v1291 = vpack.c.b16 %v1207, %v1203
        %v1292 = vpack.c.b16 %v1212, %v1208
        %v1293 = vpack.c.b16 %v1213, %v1209
        %v1294 = vpack.c.b16 %v1214, %v1210
        %v1295 = vpack.c.b16 %v1215, %v1211
        %v1296 = vpack.c.b16 %v1220, %v1216
        %v1297 = vpack.c.b16 %v1221, %v1217
        %v1298 = vpack.c.b16 %v1222, %v1218
        %v1299 = vpack.c.b16 %v1223, %v1219
        %v1300 = vpack.c.b16 %v1228, %v1224
        %v1301 = vpack.c.b16 %v1229, %v1225
        %v1302 = vpack.c.b16 %v1230, %v1226
        %v1303 = vpack.c.b16 %v1231, %v1227
        %v1304 = vpack.c.b16 %v1236, %v1232
        %v1305 = vpack.c.b16 %v1237, %v1233
        %v1306 = vpack.c.b16 %v1238, %v1234
        %v1307 = vpack.c.b16 %v1239, %v1235
        %v1308 = vpack.c.b16 %v1244, %v1240
        %v1309 = vpack.c.b16 %v1245, %v1241
        %v1310 = vpack.c.b16 %v1246, %v1242
        %v1311 = vpack.c.b16 %v1247, %v1243
        %1376 = vmatprep.subr.bf16.mxu0 %v1249
        %1377 = vmatpush1.bf16.msra.mxu0 %v1248
        %1378 = vmatprep.subr.bf16.mxu0 %v1253
        %1379 = vmatpush1.bf16.msra.mxu0 %v1252
        %1380 = vmatprep.subr.bf16.mxu0 %v1257
        %1381 = vmatpush1.bf16.msra.mxu0 %v1256
        %1382 = vmatprep.subr.bf16.mxu0 %v1261
        %1383 = vmatpush1.bf16.msra.mxu0 %v1260
        %1384 = vmatprep.subr.bf16.mxu0 %v1265
        %1385 = vmatpush1.bf16.msra.mxu0 %v1264
        %1386 = vmatprep.subr.bf16.mxu0 %v1269
        %1387 = vmatpush1.bf16.msra.mxu0 %v1268
        %1388 = vmatprep.subr.bf16.mxu0 %v1273
        %1389 = vmatpush1.bf16.msra.mxu0 %v1272
        %1390 = vmatprep.subr.bf16.mxu0 %v1277
        %1391 = vmatpush1.bf16.msra.mxu0 %v1276
        %1392 = vmatprep.subr.bf16.mxu0 %v1281
        %1393 = vmatpush1.bf16.msra.mxu0 %v1280
        %1394 = vmatprep.subr.bf16.mxu0 %v1285
        %1395 = vmatpush1.bf16.msra.mxu0 %v1284
        %1396 = vmatprep.subr.bf16.mxu0 %v1289
        %1397 = vmatpush1.bf16.msra.mxu0 %v1288
        %1398 = vmatprep.subr.bf16.mxu0 %v1293
        %1399 = vmatpush1.bf16.msra.mxu0 %v1292
        %1400 = vmatprep.subr.bf16.mxu0 %v1297
        %1401 = vmatpush1.bf16.msra.mxu0 %v1296
        %1402 = vmatprep.subr.bf16.mxu0 %v1301
        %1403 = vmatpush1.bf16.msra.mxu0 %v1300
        %1404 = vmatprep.subr.bf16.mxu0 %v1305
        %1405 = vmatpush1.bf16.msra.mxu0 %v1304
        %1406 = vmatprep.subr.bf16.mxu0 %v1309
        %1407 = vmatpush1.bf16.msra.mxu0 %v1308
        %1408 = vmatprep.mubr.bf16.mxu0 %v955
        %1409 = vmatmul.mubr.bf16.gmra.mrb[0].mxu0 %v954
        %v1410 = vpop.f32.mrb[0].mxu0
        %v1411 = vadd.f32 %v1039, %v1410
        %v1412 = vpop.f32.mrb[0].mxu0
        %v1413 = vadd.f32 %v1043, %v1412
        %v1414 = vpop.f32.mrb[0].mxu0
        %v1415 = vadd.f32 %v1039, %v1414
        %v1416 = vpop.f32.mrb[0].mxu0
        %v1417 = vadd.f32 %v1043, %v1416
        %1418 = vmatprep.mubr.bf16.mxu0 %v957
        %1419 = vmatmul.mubr.bf16.gmra.mrb[0].mxu0 %v956
        %v1420 = vpop.f32.mrb[0].mxu0
        %v1421 = vadd.f32 %v1039, %v1420
        %v1422 = vpop.f32.mrb[0].mxu0
        %v1423 = vadd.f32 %v1043, %v1422
        %v1424 = vpop.f32.mrb[0].mxu0
        %v1425 = vadd.f32 %v1039, %v1424
        %v1426 = vpop.f32.mrb[0].mxu0
        %v1427 = vadd.f32 %v1043, %v1426
        %1428 = vmatprep.mubr.bf16.mxu0 %v959
        %1429 = vmatmul.mubr.bf16.gmra.mrb[0].mxu0 %v958
        %v1430 = vpop.f32.mrb[0].mxu0
        %v1431 = vadd.f32 %v1039, %v1430
        %v1432 = vpop.f32.mrb[0].mxu0
        %v1433 = vadd.f32 %v1043, %v1432
        %v1434 = vpop.f32.mrb[0].mxu0
        %v1435 = vadd.f32 %v1039, %v1434
        %v1436 = vpop.f32.mrb[0].mxu0
        %v1437 = vadd.f32 %v1043, %v1436
        %1438 = vmatprep.mubr.bf16.mxu0 %v961
        %1439 = vmatmul.mubr.bf16.gmra.mrb[0].mxu0 %v960
        %v1440 = vpop.f32.mrb[0].mxu0
        %v1441 = vadd.f32 %v1039, %v1440
        %v1442 = vpop.f32.mrb[0].mxu0
        %v1443 = vadd.f32 %v1043, %v1442
        %v1444 = vpop.f32.mrb[0].mxu0
        %v1445 = vadd.f32 %v1039, %v1444
        %v1446 = vpop.f32.mrb[0].mxu0
        %v1447 = vadd.f32 %v1043, %v1446
        %1448 = vmatprep.mubr.bf16.mxu0 %v963
        %1449 = vmatmul.mubr.bf16.gmra.mrb[0].mxu0 %v962
        %v1450 = vpop.f32.mrb[0].mxu0
        %v1451 = vadd.f32 %v1039, %v1450
        %v1452 = vpop.f32.mrb[0].mxu0
        %v1453 = vadd.f32 %v1043, %v1452
        %v1454 = vpop.f32.mrb[0].mxu0
        %v1455 = vadd.f32 %v1039, %v1454
        %v1456 = vpop.f32.mrb[0].mxu0
        %v1457 = vadd.f32 %v1043, %v1456
        %1458 = vmatprep.mubr.bf16.mxu0 %v965
        %1459 = vmatmul.mubr.bf16.gmra.mrb[0].mxu0 %v964
        %v1460 = vpop.f32.mrb[0].mxu0
        %v1461 = vadd.f32 %v1039, %v1460
        %v1462 = vpop.f32.mrb[0].mxu0
        %v1463 = vadd.f32 %v1043, %v1462
        %v1464 = vpop.f32.mrb[0].mxu0
        %v1465 = vadd.f32 %v1039, %v1464
        %v1466 = vpop.f32.mrb[0].mxu0
        %v1467 = vadd.f32 %v1043, %v1466
        %1468 = vmatprep.mubr.bf16.mxu0 %v967
        %1469 = vmatmul.mubr.bf16.gmra.mrb[0].mxu0 %v966
        %v1470 = vpop.f32.mrb[0].mxu0
        %v1471 = vadd.f32 %v1039, %v1470
        %v1472 = vpop.f32.mrb[0].mxu0
        %v1473 = vadd.f32 %v1043, %v1472
        %v1474 = vpop.f32.mrb[0].mxu0
        %v1475 = vadd.f32 %v1039, %v1474
        %v1476 = vpop.f32.mrb[0].mxu0
        %v1477 = vadd.f32 %v1043, %v1476
        %1478 = vmatprep.mubr.bf16.mxu0 %v969
        %1479 = vmatmul.mubr.bf16.gmra.mrb[0].mxu0 %v968
        %v1480 = vpop.f32.mrb[0].mxu0
        %v1481 = vadd.f32 %v1039, %v1480
        %v1482 = vpop.f32.mrb[0].mxu0
        %v1483 = vadd.f32 %v1043, %v1482
        %v1484 = vpop.f32.mrb[0].mxu0
        %v1485 = vadd.f32 %v1039, %v1484
        %v1486 = vpop.f32.mrb[0].mxu0
        %v1487 = vadd.f32 %v1043, %v1486
        %1488 = vdwg.mxu0
        %1489 = vmatprep.subr.bf16.mxu0 %v1251
        %1490 = vmatpush1.bf16.msra.mxu0 %v1250
        %1491 = vmatprep.subr.bf16.mxu0 %v1255
        %1492 = vmatpush1.bf16.msra.mxu0 %v1254
        %1493 = vmatprep.subr.bf16.mxu0 %v1259
        %1494 = vmatpush1.bf16.msra.mxu0 %v1258
        %1495 = vmatprep.subr.bf16.mxu0 %v1263
        %1496 = vmatpush1.bf16.msra.mxu0 %v1262
        %1497 = vmatprep.subr.bf16.mxu0 %v1267
        %1498 = vmatpush1.bf16.msra.mxu0 %v1266
        %1499 = vmatprep.subr.bf16.mxu0 %v1271
        %1500 = vmatpush1.bf16.msra.mxu0 %v1270
        %1501 = vmatprep.subr.bf16.mxu0 %v1275
        %1502 = vmatpush1.bf16.msra.mxu0 %v1274
        %1503 = vmatprep.subr.bf16.mxu0 %v1279
        %1504 = vmatpush1.bf16.msra.mxu0 %v1278
        %1505 = vmatprep.subr.bf16.mxu0 %v1283
        %1506 = vmatpush1.bf16.msra.mxu0 %v1282
        %1507 = vmatprep.subr.bf16.mxu0 %v1287
        %1508 = vmatpush1.bf16.msra.mxu0 %v1286
        %1509 = vmatprep.subr.bf16.mxu0 %v1291
        %1510 = vmatpush1.bf16.msra.mxu0 %v1290
        %1511 = vmatprep.subr.bf16.mxu0 %v1295
        %1512 = vmatpush1.bf16.msra.mxu0 %v1294
        %1513 = vmatprep.subr.bf16.mxu0 %v1299
        %1514 = vmatpush1.bf16.msra.mxu0 %v1298
        %1515 = vmatprep.subr.bf16.mxu0 %v1303
        %1516 = vmatpush1.bf16.msra.mxu0 %v1302
        %1517 = vmatprep.subr.bf16.mxu0 %v1307
        %1518 = vmatpush1.bf16.msra.mxu0 %v1306
        %1519 = vmatprep.subr.bf16.mxu0 %v1311
        %1520 = vmatpush1.bf16.msra.mxu0 %v1310
        %1521 = vmatprep.mubr.bf16.mxu0 %v955
        %1522 = vmatmul.mubr.bf16.gmra.mrb[0].mxu0 %v954
        %v1523 = vpop.f32.mrb[0].mxu0
        %v1524 = vadd.f32 %v1047, %v1523
        %v1525 = vpop.f32.mrb[0].mxu0
        %v1526 = vadd.f32 %v1051, %v1525
        %v1527 = vpop.f32.mrb[0].mxu0
        %v1528 = vadd.f32 %v1047, %v1527
        %v1529 = vpop.f32.mrb[0].mxu0
        %v1530 = vadd.f32 %v1051, %v1529
        %1531 = vmatprep.mubr.bf16.mxu0 %v957
        %1532 = vmatmul.mubr.bf16.gmra.mrb[0].mxu0 %v956
        %v1533 = vpop.f32.mrb[0].mxu0
        %v1534 = vadd.f32 %v1047, %v1533
        %v1535 = vpop.f32.mrb[0].mxu0
        %v1536 = vadd.f32 %v1051, %v1535
        %v1537 = vpop.f32.mrb[0].mxu0
        %v1538 = vadd.f32 %v1047, %v1537
        %v1539 = vpop.f32.mrb[0].mxu0
        %v1540 = vadd.f32 %v1051, %v1539
        %1541 = vmatprep.mubr.bf16.mxu0 %v959
        %1542 = vmatmul.mubr.bf16.gmra.mrb[0].mxu0 %v958
        %v1543 = vpop.f32.mrb[0].mxu0
        %v1544 = vadd.f32 %v1047, %v1543
        %v1545 = vpop.f32.mrb[0].mxu0
        %v1546 = vadd.f32 %v1051, %v1545
        %v1547 = vpop.f32.mrb[0].mxu0
        %v1548 = vadd.f32 %v1047, %v1547
        %v1549 = vpop.f32.mrb[0].mxu0
        %v1550 = vadd.f32 %v1051, %v1549
        %1551 = vmatprep.mubr.bf16.mxu0 %v961
        %1552 = vmatmul.mubr.bf16.gmra.mrb[0].mxu0 %v960
        %v1553 = vpop.f32.mrb[0].mxu0
        %v1554 = vadd.f32 %v1047, %v1553
        %v1555 = vpop.f32.mrb[0].mxu0
        %v1556 = vadd.f32 %v1051, %v1555
        %v1557 = vpop.f32.mrb[0].mxu0
        %v1558 = vadd.f32 %v1047, %v1557
        %v1559 = vpop.f32.mrb[0].mxu0
        %v1560 = vadd.f32 %v1051, %v1559
        %1561 = vmatprep.mubr.bf16.mxu0 %v963
        %1562 = vmatmul.mubr.bf16.gmra.mrb[0].mxu0 %v962
        %v1563 = vpop.f32.mrb[0].mxu0
        %v1564 = vadd.f32 %v1047, %v1563
        %v1565 = vpop.f32.mrb[0].mxu0
        %v1566 = vadd.f32 %v1051, %v1565
        %v1567 = vpop.f32.mrb[0].mxu0
        %v1568 = vadd.f32 %v1047, %v1567
        %v1569 = vpop.f32.mrb[0].mxu0
        %v1570 = vadd.f32 %v1051, %v1569
        %1571 = vmatprep.mubr.bf16.mxu0 %v965
        %1572 = vmatmul.mubr.bf16.gmra.mrb[0].mxu0 %v964
        %v1573 = vpop.f32.mrb[0].mxu0
        %v1574 = vadd.f32 %v1047, %v1573
        %v1575 = vpop.f32.mrb[0].mxu0
        %v1576 = vadd.f32 %v1051, %v1575
        %v1577 = vpop.f32.mrb[0].mxu0
        %v1578 = vadd.f32 %v1047, %v1577
        %v1579 = vpop.f32.mrb[0].mxu0
        %v1580 = vadd.f32 %v1051, %v1579
        %1581 = vmatprep.mubr.bf16.mxu0 %v967
        %1582 = vmatmul.mubr.bf16.gmra.mrb[0].mxu0 %v966
        %v1583 = vpop.f32.mrb[0].mxu0
        %v1584 = vadd.f32 %v1047, %v1583
        %v1585 = vpop.f32.mrb[0].mxu0
        %v1586 = vadd.f32 %v1051, %v1585
        %v1587 = vpop.f32.mrb[0].mxu0
        %v1588 = vadd.f32 %v1047, %v1587
        %v1589 = vpop.f32.mrb[0].mxu0
        %v1590 = vadd.f32 %v1051, %v1589
        %1591 = vmatprep.mubr.bf16.mxu0 %v969
        %1592 = vmatmul.mubr.bf16.gmra.mrb[0].mxu0 %v968
        %v1593 = vpop.f32.mrb[0].mxu0
        %v1594 = vadd.f32 %v1047, %v1593
        %v1595 = vpop.f32.mrb[0].mxu0
        %v1596 = vadd.f32 %v1051, %v1595
        %v1597 = vpop.f32.mrb[0].mxu0
        %v1598 = vadd.f32 %v1047, %v1597
        %v1599 = vpop.f32.mrb[0].mxu0
        %v1600 = vadd.f32 %v1051, %v1599
        %1601 = vdwg.mxu0
        %v1602 = vmax.f32 %v1411, %v1415
        %v1603 = vmax.f32 %v1602, %v1421
        %v1604 = vmax.f32 %v1603, %v1425
        %v1605 = vmax.f32 %v1604, %v1431
        %v1606 = vmax.f32 %v1605, %v1435
        %v1607 = vmax.f32 %v1606, %v1441
        %v1608 = vmax.f32 %v1607, %v1445
        %v1609 = vrot.slane %v1608, 4
        %v1610 = vmax.f32 %v1608, %v1609
        %v1611 = vrot.slane %v1610, 2
        %v1612 = vmax.f32 %v1610, %v1611
        %v1613 = vrot.slane %v1612, 1
        %v1614 = vmax.f32 %v1612, %v1613
        %v1615 = vmax.f32 %v1413, %v1417
        %v1616 = vmax.f32 %v1615, %v1423
        %v1617 = vmax.f32 %v1616, %v1427
        %v1618 = vmax.f32 %v1617, %v1433
        %v1619 = vmax.f32 %v1618, %v1437
        %v1620 = vmax.f32 %v1619, %v1443
        %v1621 = vmax.f32 %v1620, %v1447
        %v1622 = vrot.slane %v1621, 4
        %v1623 = vmax.f32 %v1621, %v1622
        %v1624 = vrot.slane %v1623, 2
        %v1625 = vmax.f32 %v1623, %v1624
        %v1626 = vrot.slane %v1625, 1
        %v1627 = vmax.f32 %v1625, %v1626
        %v1628 = vmax.f32 %v1524, %v1528
        %v1629 = vmax.f32 %v1628, %v1534
        %v1630 = vmax.f32 %v1629, %v1538
        %v1631 = vmax.f32 %v1630, %v1544
        %v1632 = vmax.f32 %v1631, %v1548
        %v1633 = vmax.f32 %v1632, %v1554
        %v1634 = vmax.f32 %v1633, %v1558
        %v1635 = vrot.slane %v1634, 4
        %v1636 = vmax.f32 %v1634, %v1635
        %v1637 = vrot.slane %v1636, 2
        %v1638 = vmax.f32 %v1636, %v1637
        %v1639 = vrot.slane %v1638, 1
        %v1640 = vmax.f32 %v1638, %v1639
        %v1641 = vmax.f32 %v1526, %v1530
        %v1642 = vmax.f32 %v1641, %v1536
        %v1643 = vmax.f32 %v1642, %v1540
        %v1644 = vmax.f32 %v1643, %v1546
        %v1645 = vmax.f32 %v1644, %v1550
        %v1646 = vmax.f32 %v1645, %v1556
        %v1647 = vmax.f32 %v1646, %v1560
        %v1648 = vrot.slane %v1647, 4
        %v1649 = vmax.f32 %v1647, %v1648
        %v1650 = vrot.slane %v1649, 2
        %v1651 = vmax.f32 %v1649, %v1650
        %v1652 = vrot.slane %v1651, 1
        %v1653 = vmax.f32 %v1651, %v1652
        %v1654 = vmax.f32 %v1451, %v1455
        %v1655 = vmax.f32 %v1654, %v1461
        %v1656 = vmax.f32 %v1655, %v1465
        %v1657 = vmax.f32 %v1656, %v1471
        %v1658 = vmax.f32 %v1657, %v1475
        %v1659 = vmax.f32 %v1658, %v1481
        %v1660 = vmax.f32 %v1659, %v1485
        %v1661 = vrot.slane %v1660, 4
        %v1662 = vmax.f32 %v1660, %v1661
        %v1663 = vrot.slane %v1662, 2
        %v1664 = vmax.f32 %v1662, %v1663
        %v1665 = vrot.slane %v1664, 1
        %v1666 = vmax.f32 %v1664, %v1665
        %v1667 = vmax.f32 %v1453, %v1457
        %v1668 = vmax.f32 %v1667, %v1463
        %v1669 = vmax.f32 %v1668, %v1467
        %v1670 = vmax.f32 %v1669, %v1473
        %v1671 = vmax.f32 %v1670, %v1477
        %v1672 = vmax.f32 %v1671, %v1483
        %v1673 = vmax.f32 %v1672, %v1487
        %v1674 = vrot.slane %v1673, 4
        %v1675 = vmax.f32 %v1673, %v1674
        %v1676 = vrot.slane %v1675, 2
        %v1677 = vmax.f32 %v1675, %v1676
        %v1678 = vrot.slane %v1677, 1
        %v1679 = vmax.f32 %v1677, %v1678
        %v1680 = vmax.f32 %v1564, %v1568
        %v1681 = vmax.f32 %v1680, %v1574
        %v1682 = vmax.f32 %v1681, %v1578
        %v1683 = vmax.f32 %v1682, %v1584
        %v1684 = vmax.f32 %v1683, %v1588
        %v1685 = vmax.f32 %v1684, %v1594
        %v1686 = vmax.f32 %v1685, %v1598
        %v1687 = vrot.slane %v1686, 4
        %v1688 = vmax.f32 %v1686, %v1687
        %v1689 = vrot.slane %v1688, 2
        %v1690 = vmax.f32 %v1688, %v1689
        %v1691 = vrot.slane %v1690, 1
        %v1692 = vmax.f32 %v1690, %v1691
        %v1693 = vmax.f32 %v1566, %v1570
        %v1694 = vmax.f32 %v1693, %v1576
        %v1695 = vmax.f32 %v1694, %v1580
        %v1696 = vmax.f32 %v1695, %v1586
        %v1697 = vmax.f32 %v1696, %v1590
        %v1698 = vmax.f32 %v1697, %v1596
        %v1699 = vmax.f32 %v1698, %v1600
        %v1700 = vrot.slane %v1699, 4
        %v1701 = vmax.f32 %v1699, %v1700
        %v1702 = vrot.slane %v1701, 2
        %v1703 = vmax.f32 %v1701, %v1702
        %v1704 = vrot.slane %v1703, 1
        %v1705 = vmax.f32 %v1703, %v1704
        %p1706 = scmp.eq.s32.totalorder %s27, 0
        // Predicated region
        $region102: #{pointnet_encoder_xyzrgb.1} parent=84 // pred_check
          %p1707 = pneg %p1706
        $region103: #{pointnet_encoder_xyzrgb.1} parent=84 // pred_check_branch
          %1709 = sbr.rel (%p1707) target = $region105
        $region104: #{pointnet_encoder_xyzrgb.1} parent=84 // pred_region
          %v1718 = vcombine.low %v1614, %v1627
          %v1719 = vcombine.low %v1640, %v1653
          %v1721 = vunpack.c.l.s4 1983009808
          %v1722 = vunpack.c.0.s8 %v1721
          %v1723 = vlaneseq
          %v1724 = vshrl.u32 %v1723, 7
          %v1725 = vsub.s32 %v1722, %v1724
          %v1726 = vrot.slane %v1718, %v1725
          %v1728 = vunpack.c.l.s4 1983009808
          %v1729 = vunpack.c.0.s8 %v1728
          %v1730 = vlaneseq
          %v1731 = vshrl.u32 %v1730, 7
          %v1732 = vsub.s32 %v1729, %v1731
          %v1733 = vrot.slane %v1719, %v1732
          %v1734 = vcombine.low %v1726, %v1733
          %v1735 = vcombine.low %v1666, %v1679
          %v1736 = vcombine.low %v1692, %v1705
          %v1738 = vunpack.c.l.s4 1983009808
          %v1739 = vunpack.c.0.s8 %v1738
          %v1740 = vlaneseq
          %v1741 = vshrl.u32 %v1740, 7
          %v1742 = vsub.s32 %v1739, %v1741
          %v1743 = vrot.slane %v1735, %v1742
          %v1745 = vunpack.c.l.s4 1983009808
          %v1746 = vunpack.c.0.s8 %v1745
          %v1747 = vlaneseq
          %v1748 = vshrl.u32 %v1747, 7
          %v1749 = vsub.s32 %v1746, %v1748
          %v1750 = vrot.slane %v1736, %v1749
          %v1751 = vcombine.low %v1743, %v1750
          %vm1752 = vcmask 1044484
          %v1753 = vsel %vm1752, %v1734, %v1734
          %vm1754 = vcmask 1046534
          %v1755 = vsel %vm1754, %v1734, %v1753
          %v1756 = vrot.slane %v1751, 7
          %vm1757 = vcmask 1041409
          %v1758 = vsel %vm1757, %v1756, %v1755
          %vm1759 = vcmask 1043459
          %v1760 = vsel %vm1759, %v1756, %v1758
          %vm1761 = vcmask 1045509
          %v1762 = vsel %vm1761, %v1756, %v1760
          %vm1763 = vcmask 1047559
          %v1764 = vsel %vm1763, %v1756, %v1762
          %1766 = vst [vmem:[%s458] sm:$0xff] %v1764
        $region105: #{pointnet_encoder_xyzrgb.1} parent=84 // pred_fallthru
          _
        %p1767 = scmp.gt.s32.totalorder %s27, 0
        // Predicated region
        $region106: #{pointnet_encoder_xyzrgb.1} parent=84 // pred_check
          %p1768 = pneg %p1767
        $region107: #{pointnet_encoder_xyzrgb.1} parent=84 // pred_check_branch
          %1770 = sbr.rel (%p1768) target = $region109
        $region108: #{pointnet_encoder_xyzrgb.1} parent=84 // pred_region
          %v1771 = vld [vmem:[%s458] sm:$0xff]
          %v1780 = vcombine.low %v1614, %v1627
          %v1781 = vcombine.low %v1640, %v1653
          %v1783 = vunpack.c.l.s4 1983009808
          %v1784 = vunpack.c.0.s8 %v1783
          %v1785 = vlaneseq
          %v1786 = vshrl.u32 %v1785, 7
          %v1787 = vsub.s32 %v1784, %v1786
          %v1788 = vrot.slane %v1780, %v1787
          %v1790 = vunpack.c.l.s4 1983009808
          %v1791 = vunpack.c.0.s8 %v1790
          %v1792 = vlaneseq
          %v1793 = vshrl.u32 %v1792, 7
          %v1794 = vsub.s32 %v1791, %v1793
          %v1795 = vrot.slane %v1781, %v1794
          %v1796 = vcombine.low %v1788, %v1795
          %v1797 = vcombine.low %v1666, %v1679
          %v1798 = vcombine.low %v1692, %v1705
          %v1800 = vunpack.c.l.s4 1983009808
          %v1801 = vunpack.c.0.s8 %v1800
          %v1802 = vlaneseq
          %v1803 = vshrl.u32 %v1802, 7
          %v1804 = vsub.s32 %v1801, %v1803
          %v1805 = vrot.slane %v1797, %v1804
          %v1807 = vunpack.c.l.s4 1983009808
          %v1808 = vunpack.c.0.s8 %v1807
          %v1809 = vlaneseq
          %v1810 = vshrl.u32 %v1809, 7
          %v1811 = vsub.s32 %v1808, %v1810
          %v1812 = vrot.slane %v1798, %v1811
          %v1813 = vcombine.low %v1805, %v1812
          %vm1814 = vcmask 1044484
          %v1815 = vsel %vm1814, %v1796, %v1796
          %vm1816 = vcmask 1046534
          %v1817 = vsel %vm1816, %v1796, %v1815
          %v1818 = vrot.slane %v1813, 7
          %vm1819 = vcmask 1041409
          %v1820 = vsel %vm1819, %v1818, %v1817
          %vm1821 = vcmask 1043459
          %v1822 = vsel %vm1821, %v1818, %v1820
          %vm1823 = vcmask 1045509
          %v1824 = vsel %vm1823, %v1818, %v1822
          %vm1825 = vcmask 1047559
          %v1826 = vsel %vm1825, %v1818, %v1824
          %v1828 = vmax.f32 %v1771, %v1826
          %1829 = vst [vmem:[%s458] sm:$0xff] %v1828
        $region109: #{pointnet_encoder_xyzrgb.1} parent=84 // pred_fallthru
          _
        %p1830 = scmp.lt.s32.totalorder %s25, 1
        %s1831 = scalar_select %p1830, %s25, 1
        %p1832 = scmp.lt.s32.totalorder %s26, 0
        %s1833 = scalar_select %p1832, %s26, 0
        %s1834 = smul.addr %s1833, 4
        %s1835 = smul.addr %s1831, 4
        %s1836 = sadd.s32 %s1834, %s1835
        %s1837 = smul.addr %s1836, 2
        %s1838 = scalar_lea.vmem %s7, %s1837
        // Predicated region
        $region110: #{pointnet_encoder_xyzrgb.1} parent=84 // pred_check
          %p1839 = pneg %p215
        $region111: #{pointnet_encoder_xyzrgb.1} parent=84 // pred_check_branch
          %1841 = sbr.rel (%p1839) target = $region113
        $region112: #{pointnet_encoder_xyzrgb.1} parent=84 // pred_region
          _
        $region113: #{pointnet_encoder_xyzrgb.1} parent=84 // pred_fallthru
          _
      $region85: #{pointnet_encoder_xyzrgb.1} parent=5 // pred_fallthru
        _
      %p1842 = scmp.le.s32.totalorder 2, %s15
      // Predicated region
      $region114: #{pointnet_encoder_xyzrgb.1} parent=5 // pred_check
        %p1843 = pneg %p1842
      $region115: #{pointnet_encoder_xyzrgb.1} parent=5 // pred_check_branch
        %1845 = sbr.rel (%p1843) target = $region117
      $region116: #{pointnet_encoder_xyzrgb.1} parent=5 // pred_region
        %s1846 = ssub.s32 %s15, 2
        // Predicated region
        $region118: #{pointnet_encoder_xyzrgb.1} parent=116 // pred_check
          %p1847 = pneg %p221
        $region119: #{pointnet_encoder_xyzrgb.1} parent=116 // pred_check_branch
          %1849 = sbr.rel (%p1847) target = $region121
        $region120: #{pointnet_encoder_xyzrgb.1} parent=116 // pred_region
          %p1850 = scmp.lt.s32.totalorder %s28, 1
          %s1851 = scalar_select %p1850, %s28, 1
          %p1852 = scmp.lt.s32.totalorder %s29, 0
          %s1853 = scalar_select %p1852, %s29, 0
          %s1854 = smul.addr %s1853, 4
          %s1855 = smul.addr %s1851, 4
          %s1856 = sadd.s32 %s1854, %s1855
          %s1857 = smul.addr %s1856, 2
          %s1858 = scalar_lea.vmem %s7, %s1857
        $region121: #{pointnet_encoder_xyzrgb.1} parent=116 // pred_fallthru
          _
      $region117: #{pointnet_encoder_xyzrgb.1} parent=5 // pred_fallthru
        _
    $region6: #{pointnet_encoder_xyzrgb.1} parent=1 // loop_footer
      %s19 = sadd.s32 1, %s15
    $region7: #{pointnet_encoder_xyzrgb.1} parent=1 // loop_footer_branch
      %14 = sbr.rel target = $region3
    $region8: #{pointnet_encoder_xyzrgb.1} parent=1 // loop_exit
      _
    %1859 = vsyncpa [#allocation4], 1
    %s1860 = scalar_lea.sflag [#allocation4], 1
    %1861 = vsyncpa %s1860, 1
    %1862 = vsyncpa [#allocation6], 1

</llo_original>
